<compile_context>
chip_gen: v5e
topology: v5e:2x2
jax: 0.10.0
libtpu: 0.0.40
codegen_flags: <defaults>
</compile_context>

<pallas_src>
import jax
import jax.numpy as jnp
from jax.experimental import pallas as pl
from jax.experimental.pallas import tpu as pltpu

H1 = 1024   # fixed hidden size of first private layer (per module definition)
H2 = 2048   # fixed hidden size of second private layer
LANE = 128
BN_EPS = 1e-5


def _round_up(n, m):
    return ((n + m - 1) // m) * m


def if_head_kernel(x_ref, w1_ref, b1_ref, w2_ref, b2_ref, w3_ref, b3_ref,
                   o_ref, h1_ref, acc_ref):
    """Grid axis k streams H2 in tn2-wide column blocks of w2 / row blocks of w3."""
    k = pl.program_id(0)

    @pl.when(k == 0)
    def _init():
        # Layer 1 (BN folded): relu(x @ w1 + b1) -> bf16 scratch, f32 epilogue.
        xb = x_ref[...].astype(jnp.bfloat16)
        h1 = jnp.dot(xb, w1_ref[...], preferred_element_type=jnp.float32)
        h1 = jnp.maximum(h1 + b1_ref[...], 0.0)
        h1_ref[...] = h1.astype(jnp.bfloat16)
        acc_ref[...] = jnp.zeros_like(acc_ref)

    # Layer 2 column block (BN folded) + partial layer-3 contraction over this block.
    h2 = jnp.dot(h1_ref[...], w2_ref[...], preferred_element_type=jnp.float32)
    h2 = jnp.maximum(h2 + b2_ref[...], 0.0).astype(jnp.bfloat16)
    acc_ref[...] += jnp.dot(h2, w3_ref[...], preferred_element_type=jnp.float32)

    @pl.when(k == pl.num_programs(0) - 1)
    def _finalize():
        o_ref[...] = (acc_ref[...] + b3_ref[...]).astype(o_ref.dtype)


def identity_classifier_forward(x, kernel_params, out_features, *, tn2=512):
    """One pallas_call; streams w2/w3 over a (H2 // tn2,) grid."""
    w1, b1, w2, b2, w3, b3 = kernel_params
    assert H2 % tn2 == 0
    B, F_in = x.shape
    F_in_pad = w1.shape[0]
    F_out_pad = w3.shape[1]
    B_pad = _round_up(max(B, 8), 8)

    xp = x.astype(jnp.float32)
    if B_pad != B or F_in_pad != F_in:
        xp = jnp.pad(xp, ((0, B_pad - B), (0, F_in_pad - F_in)))

    grid = (H2 // tn2,)

    flops = 2 * B_pad * (F_in_pad * H1 + H1 * H2 + H2 * F_out_pad)
    bytes_accessed = (
        2 * (w1.size + w2.size + w3.size)                  # bf16 weights
        + 4 * (b1.size + b2.size + b3.size)                # f32 biases
        + 4 * xp.size + 4 * B_pad * F_out_pad              # f32 act in/out
    )

    out = pl.pallas_call(
        if_head_kernel,
        out_shape=jax.ShapeDtypeStruct((B_pad, F_out_pad), jnp.float32),
        grid_spec=pltpu.PrefetchScalarGridSpec(
            num_scalar_prefetch=0,
            grid=grid,
            in_specs=[
                pl.BlockSpec((B_pad, F_in_pad), lambda k: (0, 0)),   # x      (resident)
                pl.BlockSpec((F_in_pad, H1),    lambda k: (0, 0)),   # w1     (resident)
                pl.BlockSpec((1, H1),           lambda k: (0, 0)),   # b1
                pl.BlockSpec((H1, tn2),         lambda k: (0, k)),   # w2     (streamed)
                pl.BlockSpec((1, tn2),          lambda k: (0, k)),   # b2
                pl.BlockSpec((tn2, F_out_pad),  lambda k: (k, 0)),   # w3     (streamed)
                pl.BlockSpec((1, F_out_pad),    lambda k: (0, 0)),   # b3
            ],
            out_specs=pl.BlockSpec((B_pad, F_out_pad), lambda k: (0, 0)),
            scratch_shapes=[
                pltpu.VMEM((B_pad, H1), jnp.bfloat16),         # h1 (bf16, MXU input)
                pltpu.VMEM((B_pad, F_out_pad), jnp.float32),   # output accumulator
            ],
        ),
        compiler_params=pltpu.CompilerParams(
            dimension_semantics=("arbitrary",),   # reduction axis (output accumulated)
        ),
        cost_estimate=pl.CostEstimate(
            flops=flops, transcendentals=0, bytes_accessed=bytes_accessed),
    )(xp, w1, b1, w2, b2, w3, b3)

    return out[:B, :out_features]


def fold_and_pack_params(raw):
    """Fold eval-mode BatchNorm into the preceding Linear, pad to 128 lanes, cast
    weights to bf16 (biases stay f32)."""
    (w1, b1, g1, be1, m1, v1,
     w2, b2, g2, be2, m2, v2,
     w3, b3) = raw

    s1 = g1 / jnp.sqrt(v1 + BN_EPS)
    t1 = be1 - m1 * s1
    s2 = g2 / jnp.sqrt(v2 + BN_EPS)
    t2 = be2 - m2 * s2

    # BN(xW + b) = x(W*s) + (b*s + t)
    w1f = w1 * s1[None, :]
    b1f = b1 * s1 + t1
    w2f = w2 * s2[None, :]
    b2f = b2 * s2 + t2

    in_features = w1.shape[0]
    out_features = w3.shape[1]
    F_in_pad = _round_up(in_features, LANE)
    F_out_pad = _round_up(out_features, LANE)

    w1p = jnp.pad(w1f, ((0, F_in_pad - in_features), (0, 0)))
    w3p = jnp.pad(w3, ((0, 0), (0, F_out_pad - out_features)))
    b3p = jnp.pad(b3, (0, F_out_pad - out_features))

    return (w1p.astype(jnp.bfloat16), b1f.reshape(1, H1).astype(jnp.float32),
            w2f.astype(jnp.bfloat16), b2f.reshape(1, H2).astype(jnp.float32),
            w3p.astype(jnp.bfloat16), b3p.reshape(1, F_out_pad).astype(jnp.float32))


def make_params(key, in_features, out_features):
    """Matches PyTorch _initialize_weights: Linear xavier_normal_ weight, zero bias;
    BatchNorm1d weight=1, bias=0, running_mean=0, running_var=1 (defaults)."""
    k1, k2, k3 = jax.random.split(key, 3)

    def xavier_normal(k, fan_in, fan_out):
        std = (2.0 / (fan_in + fan_out)) ** 0.5
        return std * jax.random.normal(k, (fan_in, fan_out), dtype=jnp.float32)

    w1 = xavier_normal(k1, in_features, H1)
    b1 = jnp.zeros((H1,), jnp.float32)
    w2 = xavier_normal(k2, H1, H2)
    b2 = jnp.zeros((H2,), jnp.float32)
    w3 = xavier_normal(k3, H2, out_features)
    b3 = jnp.zeros((out_features,), jnp.float32)

    g1 = jnp.ones((H1,), jnp.float32); be1 = jnp.zeros((H1,), jnp.float32)
    m1 = jnp.zeros((H1,), jnp.float32); v1 = jnp.ones((H1,), jnp.float32)
    g2 = jnp.ones((H2,), jnp.float32); be2 = jnp.zeros((H2,), jnp.float32)
    m2 = jnp.zeros((H2,), jnp.float32); v2 = jnp.ones((H2,), jnp.float32)

    raw = (w1, b1, g1, be1, m1, v1, w2, b2, g2, be2, m2, v2, w3, b3)
    return fold_and_pack_params(raw), raw


def reference_forward(x, raw):
    """Pure-JAX f32 reference of the eval-mode module (unfolded BN)."""
    (w1, b1, g1, be1, m1, v1, w2, b2, g2, be2, m2, v2, w3, b3) = raw
    h = x @ w1 + b1
    h = (h - m1) / jnp.sqrt(v1 + BN_EPS) * g1 + be1
    h = jnp.maximum(h, 0.0)
    h = h @ w2 + b2
    h = (h - m2) / jnp.sqrt(v2 + BN_EPS) * g2 + be2
    h = jnp.maximum(h, 0.0)
    return h @ w3 + b3


if __name__ == "__main__":
    B = 8
    in_features = 32
    out_features = 16

    key = jax.random.PRNGKey(0)
    kx, kp = jax.random.split(key)
    x = jax.random.normal(kx, (B, in_features), dtype=jnp.float32)
    kernel_params, raw_params = make_params(kp, in_features, out_features)

    out = identity_classifier_forward(x, kernel_params, out_features)
    out = jax.block_until_ready(out)

    ref = reference_forward(x, raw_params)
    assert out.shape == (B, out_features)
    # bf16 weights/intermediates => relaxed tolerance vs. f32 reference.
    assert jnp.allclose(out, ref, atol=3e-2, rtol=3e-2), "mismatch vs reference"

    print("KERNEL_OK")
</pallas_src>

<mosaic_0001>
module attributes {stable_mosaic.version = 11 : i64} {
  func.func @if_head_kernel(%arg0: i32, %arg1: memref<8x128xf32, #tpu.memory_space<vmem>>, %arg2: memref<128x1024xbf16, #tpu.memory_space<vmem>>, %arg3: memref<1x1024xf32, #tpu.memory_space<vmem>>, %arg4: memref<1024x512xbf16, #tpu.memory_space<vmem>>, %arg5: memref<1x512xf32, #tpu.memory_space<vmem>>, %arg6: memref<512x128xbf16, #tpu.memory_space<vmem>>, %arg7: memref<1x128xf32, #tpu.memory_space<vmem>>, %arg8: memref<8x128xf32, #tpu.memory_space<vmem>>, %arg9: memref<8x1024xbf16, #tpu.memory_space<vmem>>, %arg10: memref<8x128xf32, #tpu.memory_space<vmem>>) attributes {dimension_semantics = [#tpu.dimension_semantics<arbitrary>], iteration_bounds = array<i64: 4>, scalar_prefetch = 0 : i64, scratch_operands = 2 : i64, tpu.core_type = #tpu.core_type<tc>, window_params = [{pipeline_mode = #tpu.pipeline_mode<synchronous>, transform_indices = @transform_0, window_bounds = array<i64: 8, 128>}, {pipeline_mode = #tpu.pipeline_mode<synchronous>, transform_indices = @transform_1, window_bounds = array<i64: 128, 1024>}, {pipeline_mode = #tpu.pipeline_mode<synchronous>, transform_indices = @transform_2, window_bounds = array<i64: 1, 1024>}, {transform_indices = @transform_3, window_bounds = array<i64: 1024, 512>}, {transform_indices = @transform_4, window_bounds = array<i64: 1, 512>}, {transform_indices = @transform_5, window_bounds = array<i64: 512, 128>}, {pipeline_mode = #tpu.pipeline_mode<synchronous>, transform_indices = @transform_6, window_bounds = array<i64: 1, 128>}, {pipeline_mode = #tpu.pipeline_mode<synchronous>, transform_indices = @transform_7, window_bounds = array<i64: 8, 128>}]} {
    %c0_i32 = arith.constant 0 : i32
    %0 = arith.cmpi eq, %arg0, %c0_i32 : i32
    %1 = arith.extui %0 : i1 to i32
    %c0_i32_0 = arith.constant 0 : i32
    %2 = arith.cmpi ne, %1, %c0_i32_0 : i32
    scf.if %2 {
      %c0_15 = arith.constant 0 : index
      %c0_16 = arith.constant 0 : index
      %20 = vector.load %arg1[%c0_15, %c0_16] : memref<8x128xf32, #tpu.memory_space<vmem>>, vector<8x128xf32>
      %21 = arith.truncf %20 : vector<8x128xf32> to vector<8x128xbf16>
      %c0_17 = arith.constant 0 : index
      %c0_18 = arith.constant 0 : index
      %22 = vector.load %arg2[%c0_17, %c0_18] : memref<128x1024xbf16, #tpu.memory_space<vmem>>, vector<128x1024xbf16>
      %cst_19 = arith.constant dense<0.000000e+00> : vector<8x1024xf32>
      %23 = tpu.matmul %21, %22, %cst_19 {dimension_numbers = #tpu.dot_dimension_numbers<[1], [0], [0], [1], [0, 0, 1, 1], [], []>} : vector<8x128xbf16>, vector<128x1024xbf16>, vector<8x1024xf32> -> vector<8x1024xf32>
      %c0_20 = arith.constant 0 : index
      %c0_21 = arith.constant 0 : index
      %24 = vector.load %arg3[%c0_20, %c0_21] : memref<1x1024xf32, #tpu.memory_space<vmem>>, vector<1x1024xf32>
      %25 = vector.broadcast %24 : vector<1x1024xf32> to vector<8x1024xf32>
      %26 = arith.addf %23, %25 : vector<8x1024xf32>
      %cst_22 = arith.constant 0.000000e+00 : f32
      %27 = vector.broadcast %cst_22 : f32 to vector<8x1024xf32>
      %28 = arith.maximumf %26, %27 : vector<8x1024xf32>
      %29 = arith.truncf %28 : vector<8x1024xf32> to vector<8x1024xbf16>
      %c0_23 = arith.constant 0 : index
      %c0_24 = arith.constant 0 : index
      %30 = vector.load %arg9[%c0_23, %c0_24] : memref<8x1024xbf16, #tpu.memory_space<vmem>>, vector<8x1024xbf16>
      tpu.vector_store %arg9[%c0_23, %c0_24], %29 {strides = array<i32>} : memref<8x1024xbf16, #tpu.memory_space<vmem>>, vector<8x1024xbf16>,
      %cst_25 = arith.constant 0.000000e+00 : f32
      %31 = vector.broadcast %cst_25 : f32 to vector<8x128xf32>
      %c0_26 = arith.constant 0 : index
      %c0_27 = arith.constant 0 : index
      %32 = vector.load %arg10[%c0_26, %c0_27] : memref<8x128xf32, #tpu.memory_space<vmem>>, vector<8x128xf32>
      tpu.vector_store %arg10[%c0_26, %c0_27], %31 {strides = array<i32>} : memref<8x128xf32, #tpu.memory_space<vmem>>, vector<8x128xf32>,
    } else {
    }
    %c0 = arith.constant 0 : index
    %c0_1 = arith.constant 0 : index
    %3 = vector.load %arg9[%c0, %c0_1] : memref<8x1024xbf16, #tpu.memory_space<vmem>>, vector<8x1024xbf16>
    %c0_2 = arith.constant 0 : index
    %c0_3 = arith.constant 0 : index
    %4 = vector.load %arg4[%c0_2, %c0_3] : memref<1024x512xbf16, #tpu.memory_space<vmem>>, vector<1024x512xbf16>
    %cst = arith.constant dense<0.000000e+00> : vector<8x512xf32>
    %5 = tpu.matmul %3, %4, %cst {dimension_numbers = #tpu.dot_dimension_numbers<[1], [0], [0], [1], [0, 0, 1, 1], [], []>} : vector<8x1024xbf16>, vector<1024x512xbf16>, vector<8x512xf32> -> vector<8x512xf32>
    %c0_4 = arith.constant 0 : index
    %c0_5 = arith.constant 0 : index
    %6 = vector.load %arg5[%c0_4, %c0_5] : memref<1x512xf32, #tpu.memory_space<vmem>>, vector<1x512xf32>
    %7 = vector.broadcast %6 : vector<1x512xf32> to vector<8x512xf32>
    %8 = arith.addf %5, %7 : vector<8x512xf32>
    %cst_6 = arith.constant 0.000000e+00 : f32
    %9 = vector.broadcast %cst_6 : f32 to vector<8x512xf32>
    %10 = arith.maximumf %8, %9 : vector<8x512xf32>
    %11 = arith.truncf %10 : vector<8x512xf32> to vector<8x512xbf16>
    %c0_7 = arith.constant 0 : index
    %c0_8 = arith.constant 0 : index
    %12 = vector.load %arg10[%c0_7, %c0_8] : memref<8x128xf32, #tpu.memory_space<vmem>>, vector<8x128xf32>
    %c0_9 = arith.constant 0 : index
    %c0_10 = arith.constant 0 : index
    %13 = vector.load %arg6[%c0_9, %c0_10] : memref<512x128xbf16, #tpu.memory_space<vmem>>, vector<512x128xbf16>
    %cst_11 = arith.constant dense<0.000000e+00> : vector<8x128xf32>
    %14 = tpu.matmul %11, %13, %cst_11 {dimension_numbers = #tpu.dot_dimension_numbers<[1], [0], [0], [1], [0, 0, 1, 1], [], []>} : vector<8x512xbf16>, vector<512x128xbf16>, vector<8x128xf32> -> vector<8x128xf32>
    %15 = arith.addf %12, %14 : vector<8x128xf32>
    %c0_12 = arith.constant 0 : index
    %c0_13 = arith.constant 0 : index
    %16 = vector.load %arg10[%c0_12, %c0_13] : memref<8x128xf32, #tpu.memory_space<vmem>>, vector<8x128xf32>
    tpu.vector_store %arg10[%c0_12, %c0_13], %15 {strides = array<i32>} : memref<8x128xf32, #tpu.memory_space<vmem>>, vector<8x128xf32>,
    %c3_i32 = arith.constant 3 : i32
    %17 = arith.cmpi eq, %arg0, %c3_i32 : i32
    %18 = arith.extui %17 : i1 to i32
    %c0_i32_14 = arith.constant 0 : i32
    %19 = arith.cmpi ne, %18, %c0_i32_14 : i32
    scf.if %19 {
      %c0_15 = arith.constant 0 : index
      %c0_16 = arith.constant 0 : index
      %20 = vector.load %arg10[%c0_15, %c0_16] : memref<8x128xf32, #tpu.memory_space<vmem>>, vector<8x128xf32>
      %c0_17 = arith.constant 0 : index
      %c0_18 = arith.constant 0 : index
      %21 = vector.load %arg7[%c0_17, %c0_18] : memref<1x128xf32, #tpu.memory_space<vmem>>, vector<1x128xf32>
      %22 = vector.broadcast %21 : vector<1x128xf32> to vector<8x128xf32>
      %23 = arith.addf %20, %22 : vector<8x128xf32>
      %c0_19 = arith.constant 0 : index
      %c0_20 = arith.constant 0 : index
      %24 = vector.load %arg8[%c0_19, %c0_20] : memref<8x128xf32, #tpu.memory_space<vmem>>, vector<8x128xf32>
      tpu.vector_store %arg8[%c0_19, %c0_20], %23 {strides = array<i32>} : memref<8x128xf32, #tpu.memory_space<vmem>>, vector<8x128xf32>,
    } else {
    }
    return
  }
  func.func @transform_0(%arg0: i32) -> (i32, i32) {
    %c0_i32 = arith.constant 0 : i32
    %c0_i32_0 = arith.constant 0 : i32
    %c0_i32_1 = arith.constant 0 : i32
    return %c0_i32, %c0_i32_0 : i32, i32
  }
  func.func @transform_1(%arg0: i32) -> (i32, i32) {
    %c0_i32 = arith.constant 0 : i32
    %c0_i32_0 = arith.constant 0 : i32
    %c0_i32_1 = arith.constant 0 : i32
    return %c0_i32, %c0_i32_0 : i32, i32
  }
  func.func @transform_2(%arg0: i32) -> (i32, i32) {
    %c0_i32 = arith.constant 0 : i32
    %c0_i32_0 = arith.constant 0 : i32
    %c0_i32_1 = arith.constant 0 : i32
    return %c0_i32, %c0_i32_0 : i32, i32
  }
  func.func @transform_3(%arg0: i32) -> (i32, i32) {
    %c0_i32 = arith.constant 0 : i32
    %c0_i32_0 = arith.constant 0 : i32
    return %c0_i32, %arg0 : i32, i32
  }
  func.func @transform_4(%arg0: i32) -> (i32, i32) {
    %c0_i32 = arith.constant 0 : i32
    %c0_i32_0 = arith.constant 0 : i32
    return %c0_i32, %arg0 : i32, i32
  }
  func.func @transform_5(%arg0: i32) -> (i32, i32) {
    %c0_i32 = arith.constant 0 : i32
    %c0_i32_0 = arith.constant 0 : i32
    return %arg0, %c0_i32 : i32, i32
  }
  func.func @transform_6(%arg0: i32) -> (i32, i32) {
    %c0_i32 = arith.constant 0 : i32
    %c0_i32_0 = arith.constant 0 : i32
    %c0_i32_1 = arith.constant 0 : i32
    return %c0_i32, %c0_i32_0 : i32, i32
  }
  func.func @transform_7(%arg0: i32) -> (i32, i32) {
    %c0_i32 = arith.constant 0 : i32
    %c0_i32_0 = arith.constant 0 : i32
    %c0_i32_1 = arith.constant 0 : i32
    return %c0_i32, %c0_i32_0 : i32, i32
  }
}

</mosaic_0001>

<llo_original>
// kernel: tpu_custom_call.1
$region0: #{tpu_custom_call.1}
  #allocation0 [shape = 'u32[]', space=smem, size = 0x4, offset = 0x4, fixed_abs, tag = 'smem constant byte address 0x4 - core index']
  #allocation1 [shape = 'u32[72,128]{1,0:T(1,128)}', space=vmem, size = 0x9000, scoped, tag = 'internal scratch']
  #allocation2 [shape = 'bf16[8,1024]{1,0:T(8,128)(2,1)}', space=vmem, size = 0x4000, scoped, tag = 'scratch operand']
  #allocation3 [shape = 'f32[8,128]{1,0:T(8,128)}', space=vmem, size = 0x1000, scoped, tag = 'scratch operand']
  %s0 = inlined_call_operand.hbm [shape: f32[8,128], index: 0, kind: input, shape index: {}]
  %s1 = inlined_call_operand.hbm [shape: bf16[128,1024], index: 1, kind: input, shape index: {}]
  %s2 = inlined_call_operand.hbm [shape: f32[1,1024], index: 2, kind: input, shape index: {}]
  %s3 = inlined_call_operand.hbm [shape: bf16[1024,2048], index: 3, kind: input, shape index: {}]
  %s4 = inlined_call_operand.hbm [shape: f32[1,2048], index: 4, kind: input, shape index: {}]
  %s5 = inlined_call_operand.hbm [shape: bf16[2048,128], index: 5, kind: input, shape index: {}]
  %s6 = inlined_call_operand.hbm [shape: f32[1,128], index: 6, kind: input, shape index: {}]
  %s7 = inlined_call_operand.hbm [shape: f32[8,128], index: 7, kind: output, shape index: {}]
  %s8 = sld [smem:[#allocation0]]
  $region97: #{tpu_custom_call.1} parent=0
    _
  %s10 = ssub.s32 1, %s8
  %s11 = scalar_select 0, %s10, %s8
  $region1: #{tpu_custom_call.1} parent=0
    #allocation4 [shape = 'u8[4096]{0}', space=vmem, size = 0x1000, scoped, tag = 'input window, operand 0, single buffered']
    #allocation5 [shape = 's32[2]{0}', space=sflag, size = 0x8, scoped, tag = 'scoped memory for tpu_custom_call.1']
    #allocation6 [shape = 's32[2]{0}', space=sflag, size = 0x8, scoped, tag = 'scoped memory for tpu_custom_call.1']
    #allocation7 [shape = 'u8[262144]{0}', space=vmem, size = 0x40000, scoped, tag = 'input window, operand 1, single buffered']
    #allocation8 [shape = 's32[1]{0}', space=sflag, size = 0x4, scoped, tag = 'scoped memory for tpu_custom_call.1']
    #allocation9 [shape = 'u8[4096]{0}', space=vmem, size = 0x1000, scoped, tag = 'input window, operand 2, single buffered']
    #allocation10 [shape = 'u8[2097152]{0}', space=vmem, size = 0x200000, scoped, tag = 'input window, operand 3']
    #allocation11 [shape = 's32[2]{0}', space=sflag, size = 0x8, scoped, tag = 'scoped memory for tpu_custom_call.1']
    #allocation12 [shape = 'u8[4096]{0}', space=vmem, size = 0x1000, scoped, tag = 'input window, operand 4']
    #allocation13 [shape = 'u8[262144]{0}', space=vmem, size = 0x40000, scoped, tag = 'input window, operand 5']
    #allocation14 [shape = 's32[2]{0}', space=sflag, size = 0x8, scoped, tag = 'scoped memory for tpu_custom_call.1']
    #allocation15 [shape = 'u8[512]{0}', space=vmem, size = 0x400, scoped, tag = 'input window, operand 6, single buffered']
    #allocation16 [shape = 'u8[4096]{0}', space=vmem, size = 0x1000, scoped, tag = 'output window, operand 0, single buffered']
    %12 = vsyncpa [#allocation5], 0
    %13 = vsyncpa [#allocation8], 0
    %14 = vsyncpa [#allocation11], 0
    %s15 = scalar_lea.sflag [#allocation11], 1
    %16 = vsyncpa %s15, 0
    %17 = vsyncpa [#allocation14], 0
    %s18 = scalar_lea.sflag [#allocation14], 1
    %19 = vsyncpa %s18, 0
    %20 = vsyncpa [#allocation6], 0
    loop: start=0, step=1, limit=6
    $region2: #{tpu_custom_call.1} parent=1 // loop_pre_header
      _
    $region3: #{tpu_custom_call.1} parent=1 // loop_header
      %s22 = sphi 0, %s26
      %p23 = scmp.ge.s32.totalorder %s22, 6
      %s30 = sphi 0, %s30
      %s32 = sphi 0, %s30
      %s33 = sphi 0, %s32
      %s47 = sphi 0, %s33
      %s51 = sphi 0, %s51
      %s53 = sphi 0, %s51
      %s54 = sphi 0, %s53
      %s68 = sphi 0, %s54
      %s72 = sphi 0, %s72
      %s74 = sphi 0, %s72
      %s75 = sphi 0, %s74
      %s89 = sphi 0, %s75
      %s95 = sphi 0, %s97
      %s98 = sphi 0, %s95
      %s99 = sphi 0, %s98
      %s115 = sphi 0, %s99
      %s121 = sphi 0, %s123
      %s124 = sphi 0, %s121
      %s125 = sphi 0, %s124
      %s141 = sphi 0, %s125
      %s147 = sphi 0, %s149
      %s150 = sphi 0, %s147
      %s151 = sphi 0, %s150
      %s167 = sphi 0, %s151
      %s171 = sphi 0, %s171
      %s173 = sphi 0, %s171
      %s174 = sphi 0, %s173
      %s188 = sphi 0, %s174
      %s192 = sphi 0, %s192
      %s194 = sphi 0, %s192
      %s195 = sphi 0, %s194
      %s209 = sphi 0, %s195
    $region4: #{tpu_custom_call.1} parent=1 // loop_header_branch
      %25 = sbr.rel (%p23) target = $region8
    $region5: #{tpu_custom_call.1} parent=1 // loop_body
      %s27 = ssub.s32 %s22, 1
      %s28 = ssub.s32 %s22, 2
      %s29 = sadd.s32 %s22, 1
      %s31 = sadd.s32 %s30, 1
      %p34 = scmp.eq.s32.totalorder %s22, 3
      %p35 = scmp.ne.s32.totalorder %s30, %s32
      %p36 = scmp.eq.s32.totalorder %s22, 0
      %p37 = por %p35, %p36
      %p38 = scmp.ne.s32.totalorder %s30, %s32
      %p39 = scmp.eq.s32.totalorder %s27, 3
      %p40 = por %p38, %p39
      %p41 = scmp.ne.s32.totalorder %s32, %s33
      %p42 = scmp.eq.s32.totalorder %s27, 0
      %p43 = por %p41, %p42
      %p44 = scmp.ne.s32.totalorder %s32, %s33
      %p45 = scmp.eq.s32.totalorder %s28, 3
      %p46 = por %p44, %p45
      %p48 = scmp.ne.s32.totalorder %s33, %s47
      %p49 = scmp.eq.s32.totalorder %s28, 0
      %p50 = por %p48, %p49
      %s52 = sadd.s32 %s51, 1
      %p55 = scmp.eq.s32.totalorder %s22, 3
      %p56 = scmp.ne.s32.totalorder %s51, %s53
      %p57 = scmp.eq.s32.totalorder %s22, 0
      %p58 = por %p56, %p57
      %p59 = scmp.ne.s32.totalorder %s51, %s53
      %p60 = scmp.eq.s32.totalorder %s27, 3
      %p61 = por %p59, %p60
      %p62 = scmp.ne.s32.totalorder %s53, %s54
      %p63 = scmp.eq.s32.totalorder %s27, 0
      %p64 = por %p62, %p63
      %p65 = scmp.ne.s32.totalorder %s53, %s54
      %p66 = scmp.eq.s32.totalorder %s28, 3
      %p67 = por %p65, %p66
      %p69 = scmp.ne.s32.totalorder %s54, %s68
      %p70 = scmp.eq.s32.totalorder %s28, 0
      %p71 = por %p69, %p70
      %s73 = sadd.s32 %s72, 1
      %p76 = scmp.eq.s32.totalorder %s22, 3
      %p77 = scmp.ne.s32.totalorder %s72, %s74
      %p78 = scmp.eq.s32.totalorder %s22, 0
      %p79 = por %p77, %p78
      %p80 = scmp.ne.s32.totalorder %s72, %s74
      %p81 = scmp.eq.s32.totalorder %s27, 3
      %p82 = por %p80, %p81
      %p83 = scmp.ne.s32.totalorder %s74, %s75
      %p84 = scmp.eq.s32.totalorder %s27, 0
      %p85 = por %p83, %p84
      %p86 = scmp.ne.s32.totalorder %s74, %s75
      %p87 = scmp.eq.s32.totalorder %s28, 3
      %p88 = por %p86, %p87
      %p90 = scmp.ne.s32.totalorder %s75, %s89
      %p91 = scmp.eq.s32.totalorder %s28, 0
      %p92 = por %p90, %p91
      %s93 = ssub.s32 %s22, %s29
      %p94 = scmp.eq.s32.totalorder %s93, 0
      %s96 = sadd.s32 %s95, 1
      %s97 = scalar_select %p94, %s95, %s96
      %p100 = pneg %p94
      %p101 = scmp.eq.s32.totalorder %s22, 3
      %p102 = por %p100, %p101
      %p103 = scmp.ne.s32.totalorder %s95, %s98
      %p104 = scmp.eq.s32.totalorder %s22, 0
      %p105 = por %p103, %p104
      %p106 = scmp.ne.s32.totalorder %s95, %s98
      %p107 = scmp.eq.s32.totalorder %s27, 3
      %p108 = por %p106, %p107
      %p109 = scmp.ne.s32.totalorder %s98, %s99
      %p110 = scmp.eq.s32.totalorder %s27, 0
      %p111 = por %p109, %p110
      %p112 = scmp.ne.s32.totalorder %s98, %s99
      %p113 = scmp.eq.s32.totalorder %s28, 3
      %p114 = por %p112, %p113
      %p116 = scmp.ne.s32.totalorder %s99, %s115
      %p117 = scmp.eq.s32.totalorder %s28, 0
      %p118 = por %p116, %p117
      %s119 = ssub.s32 %s22, %s29
      %p120 = scmp.eq.s32.totalorder %s119, 0
      %s122 = sadd.s32 %s121, 1
      %s123 = scalar_select %p120, %s121, %s122
      %p126 = pneg %p120
      %p127 = scmp.eq.s32.totalorder %s22, 3
      %p128 = por %p126, %p127
      %p129 = scmp.ne.s32.totalorder %s121, %s124
      %p130 = scmp.eq.s32.totalorder %s22, 0
      %p131 = por %p129, %p130
      %p132 = scmp.ne.s32.totalorder %s121, %s124
      %p133 = scmp.eq.s32.totalorder %s27, 3
      %p134 = por %p132, %p133
      %p135 = scmp.ne.s32.totalorder %s124, %s125
      %p136 = scmp.eq.s32.totalorder %s27, 0
      %p137 = por %p135, %p136
      %p138 = scmp.ne.s32.totalorder %s124, %s125
      %p139 = scmp.eq.s32.totalorder %s28, 3
      %p140 = por %p138, %p139
      %p142 = scmp.ne.s32.totalorder %s125, %s141
      %p143 = scmp.eq.s32.totalorder %s28, 0
      %p144 = por %p142, %p143
      %s145 = ssub.s32 %s22, %s29
      %p146 = scmp.eq.s32.totalorder %s145, 0
      %s148 = sadd.s32 %s147, 1
      %s149 = scalar_select %p146, %s147, %s148
      %p152 = pneg %p146
      %p153 = scmp.eq.s32.totalorder %s22, 3
      %p154 = por %p152, %p153
      %p155 = scmp.ne.s32.totalorder %s147, %s150
      %p156 = scmp.eq.s32.totalorder %s22, 0
      %p157 = por %p155, %p156
      %p158 = scmp.ne.s32.totalorder %s147, %s150
      %p159 = scmp.eq.s32.totalorder %s27, 3
      %p160 = por %p158, %p159
      %p161 = scmp.ne.s32.totalorder %s150, %s151
      %p162 = scmp.eq.s32.totalorder %s27, 0
      %p163 = por %p161, %p162
      %p164 = scmp.ne.s32.totalorder %s150, %s151
      %p165 = scmp.eq.s32.totalorder %s28, 3
      %p166 = por %p164, %p165
      %p168 = scmp.ne.s32.totalorder %s151, %s167
      %p169 = scmp.eq.s32.totalorder %s28, 0
      %p170 = por %p168, %p169
      %s172 = sadd.s32 %s171, 1
      %p175 = scmp.eq.s32.totalorder %s22, 3
      %p176 = scmp.ne.s32.totalorder %s171, %s173
      %p177 = scmp.eq.s32.totalorder %s22, 0
      %p178 = por %p176, %p177
      %p179 = scmp.ne.s32.totalorder %s171, %s173
      %p180 = scmp.eq.s32.totalorder %s27, 3
      %p181 = por %p179, %p180
      %p182 = scmp.ne.s32.totalorder %s173, %s174
      %p183 = scmp.eq.s32.totalorder %s27, 0
      %p184 = por %p182, %p183
      %p185 = scmp.ne.s32.totalorder %s173, %s174
      %p186 = scmp.eq.s32.totalorder %s28, 3
      %p187 = por %p185, %p186
      %p189 = scmp.ne.s32.totalorder %s174, %s188
      %p190 = scmp.eq.s32.totalorder %s28, 0
      %p191 = por %p189, %p190
      %s193 = sadd.s32 %s192, 1
      %p196 = scmp.eq.s32.totalorder %s22, 3
      %p197 = scmp.ne.s32.totalorder %s192, %s194
      %p198 = scmp.eq.s32.totalorder %s22, 0
      %p199 = por %p197, %p198
      %p200 = scmp.ne.s32.totalorder %s192, %s194
      %p201 = scmp.eq.s32.totalorder %s27, 3
      %p202 = por %p200, %p201
      %p203 = scmp.ne.s32.totalorder %s194, %s195
      %p204 = scmp.eq.s32.totalorder %s27, 0
      %p205 = por %p203, %p204
      %p206 = scmp.ne.s32.totalorder %s194, %s195
      %p207 = scmp.eq.s32.totalorder %s28, 3
      %p208 = por %p206, %p207
      %p210 = scmp.ne.s32.totalorder %s195, %s209
      %p211 = scmp.eq.s32.totalorder %s28, 0
      %p212 = por %p210, %p211
      %p213 = scmp.le.s32.totalorder 1, %s22
      %p214 = scmp.lt.s32.totalorder %s22, 5
      %p215 = pnand %p213, %p214
      %p216 = pneg %p215
      // Predicated region
      $region9: #{tpu_custom_call.1} parent=5 // pred_check
        _
      $region10: #{tpu_custom_call.1} parent=5 // pred_check_branch
        %218 = sbr.rel (%p215) target = $region12
      $region11: #{tpu_custom_call.1} parent=5 // pred_region
        %s219 = ssub.s32 %s22, 1
        // Predicated region
        $region13: #{tpu_custom_call.1} parent=11 // pred_check
          %p220 = pneg %p43
        $region14: #{tpu_custom_call.1} parent=11 // pred_check_branch
          %222 = sbr.rel (%p220) target = $region16
        $region15: #{tpu_custom_call.1} parent=11 // pred_region
          %224 = vsyncadd [#allocation5], 0
          %s226 = sshll.u32 %s0, 4
          %s227 = int_to_ptr.hbm [resolvable:$true] %s226
          %s228 = sshll.u32 [#allocation4], 4
          %s229 = int_to_ptr.vmem [resolvable:$true] %s228
          %231 = dma.hbm_to_vmem [thread:$0]  %s227, 128, %s229, [#allocation5]
        $region16: #{tpu_custom_call.1} parent=11 // pred_fallthru
          _
        // Predicated region
        $region17: #{tpu_custom_call.1} parent=11 // pred_check
          %p232 = pneg %p64
        $region18: #{tpu_custom_call.1} parent=11 // pred_check_branch
          %234 = sbr.rel (%p232) target = $region20
        $region19: #{tpu_custom_call.1} parent=11 // pred_region
          %236 = vsyncadd [#allocation8], 0
          %s237 = sshll.u32 %s1, 4
          %s238 = int_to_ptr.hbm [resolvable:$true] %s237
          %s239 = sshll.u32 [#allocation7], 4
          %s240 = int_to_ptr.vmem [resolvable:$true] %s239
          %245 = dma.hbm_to_vmem [thread:$0]  %s238, 8192, %s240, [#allocation8], 512, 512, 32
        $region20: #{tpu_custom_call.1} parent=11 // pred_fallthru
          _
        // Predicated region
        $region21: #{tpu_custom_call.1} parent=11 // pred_check
          %p246 = pneg %p85
        $region22: #{tpu_custom_call.1} parent=11 // pred_check_branch
          %248 = sbr.rel (%p246) target = $region24
        $region23: #{tpu_custom_call.1} parent=11 // pred_region
          %250 = vsyncadd [#allocation8], 0
          %s252 = sshll.u32 %s2, 4
          %s253 = int_to_ptr.hbm [resolvable:$true] %s252
          %s254 = sshll.u32 [#allocation9], 4
          %s255 = int_to_ptr.vmem [resolvable:$true] %s254
          %257 = dma.hbm_to_vmem [thread:$0]  %s253, 128, %s255, [#allocation8]
        $region24: #{tpu_custom_call.1} parent=11 // pred_fallthru
          _
        // Predicated region
        $region25: #{tpu_custom_call.1} parent=11 // pred_check
          %p258 = pneg %p184
        $region26: #{tpu_custom_call.1} parent=11 // pred_check_branch
          %260 = sbr.rel (%p258) target = $region28
        $region27: #{tpu_custom_call.1} parent=11 // pred_region
          %262 = vsyncadd [#allocation14], 0
          %s264 = sshll.u32 %s6, 4
          %s265 = int_to_ptr.hbm [resolvable:$true] %s264
          %s266 = sshll.u32 [#allocation15], 4
          %s267 = int_to_ptr.vmem [resolvable:$true] %s266
          %269 = dma.hbm_to_vmem [thread:$0]  %s265, 16, %s267, [#allocation14]
        $region28: #{tpu_custom_call.1} parent=11 // pred_fallthru
          _
      $region12: #{tpu_custom_call.1} parent=5 // pred_fallthru
        _
      %p270 = scmp.lt.s32.totalorder %s22, 4
      // Predicated region
      $region29: #{tpu_custom_call.1} parent=5 // pred_check
        %p271 = pneg %p270
      $region30: #{tpu_custom_call.1} parent=5 // pred_check_branch
        %273 = sbr.rel (%p271) target = $region32
      $region31: #{tpu_custom_call.1} parent=5 // pred_region
        // Predicated region
        $region33: #{tpu_custom_call.1} parent=31 // pred_check
          %p274 = pneg %p105
        $region34: #{tpu_custom_call.1} parent=31 // pred_check_branch
          %276 = sbr.rel (%p274) target = $region36
        $region35: #{tpu_custom_call.1} parent=31 // pred_region
          %s277 = sand.u32 %s22, 1
          %s278 = scalar_lea.sflag [#allocation11], %s277
          %s279 = sand.u32 %s95, 1
          %s280 = smul.addr %s279, 2048
          %s281 = scalar_lea.vmem [#allocation10], %s280
          %s282 = smul.u32 4, %s22
          %284 = vsyncadd %s278, 0
          %s285 = smul.addr %s282, 4
          %s286 = scalar_lea.hbm %s3, %s285
          %s287 = sshll.u32 %s286, 4
          %s288 = int_to_ptr.hbm [resolvable:$true] %s287
          %s289 = sshll.u32 %s281, 4
          %s290 = int_to_ptr.vmem [resolvable:$true] %s289
          %295 = dma.hbm_to_vmem [thread:$0]  %s288, 32768, %s290, %s278, 1024, 256, 16
        $region36: #{tpu_custom_call.1} parent=31 // pred_fallthru
          _
        // Predicated region
        $region37: #{tpu_custom_call.1} parent=31 // pred_check
          %p296 = pneg %p131
        $region38: #{tpu_custom_call.1} parent=31 // pred_check_branch
          %298 = sbr.rel (%p296) target = $region40
        $region39: #{tpu_custom_call.1} parent=31 // pred_region
          %s299 = sand.u32 %s22, 1
          %s300 = scalar_lea.sflag [#allocation11], %s299
          %s301 = sand.u32 %s121, 1
          %s302 = smul.addr %s301, 4
          %s303 = scalar_lea.vmem [#allocation12], %s302
          %s304 = smul.u32 4, %s22
          %306 = vsyncadd %s300, 0
          %s307 = scalar_lea.hbm %s4, %s304
          %s309 = sshll.u32 %s307, 4
          %s310 = int_to_ptr.hbm [resolvable:$true] %s309
          %s311 = sshll.u32 %s303, 4
          %s312 = int_to_ptr.vmem [resolvable:$true] %s311
          %314 = dma.hbm_to_vmem [thread:$0]  %s310, 64, %s312, %s300
        $region40: #{tpu_custom_call.1} parent=31 // pred_fallthru
          _
        // Predicated region
        $region41: #{tpu_custom_call.1} parent=31 // pred_check
          %p315 = pneg %p157
        $region42: #{tpu_custom_call.1} parent=31 // pred_check_branch
          %317 = sbr.rel (%p315) target = $region44
        $region43: #{tpu_custom_call.1} parent=31 // pred_region
          %s318 = sand.u32 %s22, 1
          %s319 = scalar_lea.sflag [#allocation14], %s318
          %s320 = sand.u32 %s147, 1
          %s321 = smul.addr %s320, 256
          %s322 = scalar_lea.vmem [#allocation13], %s321
          %s323 = smul.u32 64, %s22
          %325 = vsyncadd %s319, 0
          %s326 = smul.addr %s323, 4
          %s327 = scalar_lea.hbm %s5, %s326
          %s328 = sshll.u32 %s327, 4
          %s329 = int_to_ptr.hbm [resolvable:$true] %s328
          %s330 = sshll.u32 %s322, 4
          %s331 = int_to_ptr.vmem [resolvable:$true] %s330
          %336 = dma.hbm_to_vmem [thread:$0]  %s329, 4096, %s331, %s319, 64, 64, 4
        $region44: #{tpu_custom_call.1} parent=31 // pred_fallthru
          _
      $region32: #{tpu_custom_call.1} parent=5 // pred_fallthru
        _
      %p337 = scmp.le.s32.totalorder 1, %s22
      %p338 = scmp.lt.s32.totalorder %s22, 5
      %p339 = pnand %p337, %p338
      %p340 = pneg %p339
      // Predicated region
      $region45: #{tpu_custom_call.1} parent=5 // pred_check
        _
      $region46: #{tpu_custom_call.1} parent=5 // pred_check_branch
        %342 = sbr.rel (%p339) target = $region48
      $region47: #{tpu_custom_call.1} parent=5 // pred_region
        %s343 = ssub.s32 %s22, 1
        // Predicated region
        $region49: #{tpu_custom_call.1} parent=47 // pred_check
          %p344 = pneg %p43
        $region50: #{tpu_custom_call.1} parent=47 // pred_check_branch
          %346 = sbr.rel (%p344) target = $region52
        $region51: #{tpu_custom_call.1} parent=47 // pred_region
          %348 = dma.done [#allocation5], 128
        $region52: #{tpu_custom_call.1} parent=47 // pred_fallthru
          _
        // Predicated region
        $region53: #{tpu_custom_call.1} parent=47 // pred_check
          %p349 = pneg %p64
        $region54: #{tpu_custom_call.1} parent=47 // pred_check_branch
          %351 = sbr.rel (%p349) target = $region56
        $region55: #{tpu_custom_call.1} parent=47 // pred_region
          %353 = dma.done [#allocation8], 8192
        $region56: #{tpu_custom_call.1} parent=47 // pred_fallthru
          _
        // Predicated region
        $region57: #{tpu_custom_call.1} parent=47 // pred_check
          %p354 = pneg %p85
        $region58: #{tpu_custom_call.1} parent=47 // pred_check_branch
          %356 = sbr.rel (%p354) target = $region60
        $region59: #{tpu_custom_call.1} parent=47 // pred_region
          %358 = dma.done [#allocation8], 128
        $region60: #{tpu_custom_call.1} parent=47 // pred_fallthru
          _
        %s359 = sand.u32 %s27, 1
        %s360 = scalar_lea.sflag [#allocation11], %s359
        %s361 = sand.u32 %s98, 1
        %s362 = smul.addr %s361, 2048
        %s363 = scalar_lea.vmem [#allocation10], %s362
        // Predicated region
        $region61: #{tpu_custom_call.1} parent=47 // pred_check
          %p364 = pneg %p111
        $region62: #{tpu_custom_call.1} parent=47 // pred_check_branch
          %366 = sbr.rel (%p364) target = $region64
        $region63: #{tpu_custom_call.1} parent=47 // pred_region
          %368 = dma.done %s360, 32768
        $region64: #{tpu_custom_call.1} parent=47 // pred_fallthru
          _
        %s369 = sand.u32 %s27, 1
        %s370 = scalar_lea.sflag [#allocation11], %s369
        %s371 = sand.u32 %s124, 1
        %s372 = smul.addr %s371, 4
        %s373 = scalar_lea.vmem [#allocation12], %s372
        // Predicated region
        $region65: #{tpu_custom_call.1} parent=47 // pred_check
          %p374 = pneg %p137
        $region66: #{tpu_custom_call.1} parent=47 // pred_check_branch
          %376 = sbr.rel (%p374) target = $region68
        $region67: #{tpu_custom_call.1} parent=47 // pred_region
          %378 = dma.done %s370, 64
        $region68: #{tpu_custom_call.1} parent=47 // pred_fallthru
          _
        %s379 = sand.u32 %s27, 1
        %s380 = scalar_lea.sflag [#allocation14], %s379
        %s381 = sand.u32 %s150, 1
        %s382 = smul.addr %s381, 256
        %s383 = scalar_lea.vmem [#allocation13], %s382
        // Predicated region
        $region69: #{tpu_custom_call.1} parent=47 // pred_check
          %p384 = pneg %p163
        $region70: #{tpu_custom_call.1} parent=47 // pred_check_branch
          %386 = sbr.rel (%p384) target = $region72
        $region71: #{tpu_custom_call.1} parent=47 // pred_region
          %388 = dma.done %s380, 4096
        $region72: #{tpu_custom_call.1} parent=47 // pred_fallthru
          _
        // Predicated region
        $region73: #{tpu_custom_call.1} parent=47 // pred_check
          %p389 = pneg %p184
        $region74: #{tpu_custom_call.1} parent=47 // pred_check_branch
          %391 = sbr.rel (%p389) target = $region76
        $region75: #{tpu_custom_call.1} parent=47 // pred_region
          %393 = dma.done [#allocation14], 16
        $region76: #{tpu_custom_call.1} parent=47 // pred_fallthru
          _
        %p394 = pneg %p43
        %p395 = pneg %p40
        %p396 = pneg %p64
        %p397 = pneg %p61
        %p398 = pneg %p85
        %p399 = pneg %p82
        %s400 = sand.u32 %s27, 1
        %s401 = scalar_lea.sflag [#allocation11], %s400
        %s402 = sand.u32 %s98, 1
        %s403 = smul.addr %s402, 2048
        %s404 = scalar_lea.vmem [#allocation10], %s403
        %p405 = pneg %p111
        %p406 = pneg %p108
        %s407 = sand.u32 %s27, 1
        %s408 = scalar_lea.sflag [#allocation11], %s407
        %s409 = sand.u32 %s124, 1
        %s410 = smul.addr %s409, 4
        %s411 = scalar_lea.vmem [#allocation12], %s410
        %p412 = pneg %p137
        %p413 = pneg %p134
        %s414 = sand.u32 %s27, 1
        %s415 = scalar_lea.sflag [#allocation14], %s414
        %s416 = sand.u32 %s150, 1
        %s417 = smul.addr %s416, 256
        %s418 = scalar_lea.vmem [#allocation13], %s417
        %p419 = pneg %p163
        %p420 = pneg %p160
        %p421 = pneg %p184
        %p422 = pneg %p181
        %p423 = pneg %p205
        %p424 = pneg %p202
        %s425 = smul.u32 4, %s27
        %s426 = smul.u32 4, %s27
        %s427 = smul.u32 64, %s27
        %p428 = scmp.eq.s32.totalorder %s27, 0
        // Predicated region
        $region77: #{tpu_custom_call.1} parent=47 // pred_check
          %p429 = pneg %p428
        $region78: #{tpu_custom_call.1} parent=47 // pred_check_branch
          %431 = sbr.rel (%p429) target = $region80
        $region79: #{tpu_custom_call.1} parent=47 // pred_region
          %v432 = vld [vmem:[#allocation4] sm:$0xff]
          %v433 = vpack.c.bf16 %v432, %v432
          %v434 = vld [vmem:[#allocation7] sm:$0xff]
          %v435 = vld [vmem:[#allocation7 + $0x8] sm:$0xff]
          %v436 = vld [vmem:[#allocation7 + $0x10] sm:$0xff]
          %v437 = vld [vmem:[#allocation7 + $0x18] sm:$0xff]
          %v438 = vld [vmem:[#allocation7 + $0x20] sm:$0xff]
          %v439 = vld [vmem:[#allocation7 + $0x28] sm:$0xff]
          %v440 = vld [vmem:[#allocation7 + $0x30] sm:$0xff]
          %v441 = vld [vmem:[#allocation7 + $0x38] sm:$0xff]
          %v442 = vld [vmem:[#allocation7 + $0x40] sm:$0xff]
          %v443 = vld [vmem:[#allocation7 + $0x48] sm:$0xff]
          %v444 = vld [vmem:[#allocation7 + $0x50] sm:$0xff]
          %v445 = vld [vmem:[#allocation7 + $0x58] sm:$0xff]
          %v446 = vld [vmem:[#allocation7 + $0x60] sm:$0xff]
          %v447 = vld [vmem:[#allocation7 + $0x68] sm:$0xff]
          %v448 = vld [vmem:[#allocation7 + $0x70] sm:$0xff]
          %v449 = vld [vmem:[#allocation7 + $0x78] sm:$0xff]
          %v450 = vld [vmem:[#allocation7 + $0x80] sm:$0xff]
          %v451 = vld [vmem:[#allocation7 + $0x88] sm:$0xff]
          %v452 = vld [vmem:[#allocation7 + $0x90] sm:$0xff]
          %v453 = vld [vmem:[#allocation7 + $0x98] sm:$0xff]
          %v454 = vld [vmem:[#allocation7 + $0xa0] sm:$0xff]
          %v455 = vld [vmem:[#allocation7 + $0xa8] sm:$0xff]
          %v456 = vld [vmem:[#allocation7 + $0xb0] sm:$0xff]
          %v457 = vld [vmem:[#allocation7 + $0xb8] sm:$0xff]
          %v458 = vld [vmem:[#allocation7 + $0xc0] sm:$0xff]
          %v459 = vld [vmem:[#allocation7 + $0xc8] sm:$0xff]
          %v460 = vld [vmem:[#allocation7 + $0xd0] sm:$0xff]
          %v461 = vld [vmem:[#allocation7 + $0xd8] sm:$0xff]
          %v462 = vld [vmem:[#allocation7 + $0xe0] sm:$0xff]
          %v463 = vld [vmem:[#allocation7 + $0xe8] sm:$0xff]
          %v464 = vld [vmem:[#allocation7 + $0xf0] sm:$0xff]
          %v465 = vld [vmem:[#allocation7 + $0xf8] sm:$0xff]
          %v466 = vld [vmem:[#allocation7 + $0x100] sm:$0xff]
          %v467 = vld [vmem:[#allocation7 + $0x108] sm:$0xff]
          %v468 = vld [vmem:[#allocation7 + $0x110] sm:$0xff]
          %v469 = vld [vmem:[#allocation7 + $0x118] sm:$0xff]
          %v470 = vld [vmem:[#allocation7 + $0x120] sm:$0xff]
          %v471 = vld [vmem:[#allocation7 + $0x128] sm:$0xff]
          %v472 = vld [vmem:[#allocation7 + $0x130] sm:$0xff]
          %v473 = vld [vmem:[#allocation7 + $0x138] sm:$0xff]
          %v474 = vld [vmem:[#allocation7 + $0x140] sm:$0xff]
          %v475 = vld [vmem:[#allocation7 + $0x148] sm:$0xff]
          %v476 = vld [vmem:[#allocation7 + $0x150] sm:$0xff]
          %v477 = vld [vmem:[#allocation7 + $0x158] sm:$0xff]
          %v478 = vld [vmem:[#allocation7 + $0x160] sm:$0xff]
          %v479 = vld [vmem:[#allocation7 + $0x168] sm:$0xff]
          %v480 = vld [vmem:[#allocation7 + $0x170] sm:$0xff]
          %v481 = vld [vmem:[#allocation7 + $0x178] sm:$0xff]
          %v482 = vld [vmem:[#allocation7 + $0x180] sm:$0xff]
          %v483 = vld [vmem:[#allocation7 + $0x188] sm:$0xff]
          %v484 = vld [vmem:[#allocation7 + $0x190] sm:$0xff]
          %v485 = vld [vmem:[#allocation7 + $0x198] sm:$0xff]
          %v486 = vld [vmem:[#allocation7 + $0x1a0] sm:$0xff]
          %v487 = vld [vmem:[#allocation7 + $0x1a8] sm:$0xff]
          %v488 = vld [vmem:[#allocation7 + $0x1b0] sm:$0xff]
          %v489 = vld [vmem:[#allocation7 + $0x1b8] sm:$0xff]
          %v490 = vld [vmem:[#allocation7 + $0x1c0] sm:$0xff]
          %v491 = vld [vmem:[#allocation7 + $0x1c8] sm:$0xff]
          %v492 = vld [vmem:[#allocation7 + $0x1d0] sm:$0xff]
          %v493 = vld [vmem:[#allocation7 + $0x1d8] sm:$0xff]
          %v494 = vld [vmem:[#allocation7 + $0x1e0] sm:$0xff]
          %v495 = vld [vmem:[#allocation7 + $0x1e8] sm:$0xff]
          %v496 = vld [vmem:[#allocation7 + $0x1f0] sm:$0xff]
          %v497 = vld [vmem:[#allocation7 + $0x1f8] sm:$0xff]
          %v498 = vld [vmem:[#allocation9] sm:$0xff]
          %v500 = vperm.slane %v498, 0
          %v501 = vperm.slane %v498, 1
          %v502 = vperm.slane %v498, 2
          %v503 = vperm.slane %v498, 3
          %v504 = vperm.slane %v498, 4
          %v505 = vperm.slane %v498, 5
          %v506 = vperm.slane %v498, 6
          %v507 = vperm.slane %v498, 7
          %v580 = vunpack.c.l.b16 %v434
          %v581 = vunpack.c.h.b16 %v434
          %v582 = vunpack.c.l.b16 %v435
          %v583 = vunpack.c.h.b16 %v435
          %v584 = vunpack.c.l.b16 %v436
          %v585 = vunpack.c.h.b16 %v436
          %v586 = vunpack.c.l.b16 %v437
          %v587 = vunpack.c.h.b16 %v437
          %v588 = vunpack.c.l.b16 %v438
          %v589 = vunpack.c.h.b16 %v438
          %v590 = vunpack.c.l.b16 %v439
          %v591 = vunpack.c.h.b16 %v439
          %v592 = vunpack.c.l.b16 %v440
          %v593 = vunpack.c.h.b16 %v440
          %v594 = vunpack.c.l.b16 %v441
          %v595 = vunpack.c.h.b16 %v441
          %v596 = vunpack.c.l.b16 %v442
          %v597 = vunpack.c.h.b16 %v442
          %v598 = vunpack.c.l.b16 %v443
          %v599 = vunpack.c.h.b16 %v443
          %v600 = vunpack.c.l.b16 %v444
          %v601 = vunpack.c.h.b16 %v444
          %v602 = vunpack.c.l.b16 %v445
          %v603 = vunpack.c.h.b16 %v445
          %v604 = vunpack.c.l.b16 %v446
          %v605 = vunpack.c.h.b16 %v446
          %v606 = vunpack.c.l.b16 %v447
          %v607 = vunpack.c.h.b16 %v447
          %v608 = vunpack.c.l.b16 %v448
          %v609 = vunpack.c.h.b16 %v448
          %v610 = vunpack.c.l.b16 %v449
          %v611 = vunpack.c.h.b16 %v449
          %v612 = vunpack.c.l.b16 %v450
          %v613 = vunpack.c.h.b16 %v450
          %v614 = vunpack.c.l.b16 %v451
          %v615 = vunpack.c.h.b16 %v451
          %v616 = vunpack.c.l.b16 %v452
          %v617 = vunpack.c.h.b16 %v452
          %v618 = vunpack.c.l.b16 %v453
          %v619 = vunpack.c.h.b16 %v453
          %v620 = vunpack.c.l.b16 %v454
          %v621 = vunpack.c.h.b16 %v454
          %v622 = vunpack.c.l.b16 %v455
          %v623 = vunpack.c.h.b16 %v455
          %v624 = vunpack.c.l.b16 %v456
          %v625 = vunpack.c.h.b16 %v456
          %v626 = vunpack.c.l.b16 %v457
          %v627 = vunpack.c.h.b16 %v457
          %v628 = vunpack.c.l.b16 %v458
          %v629 = vunpack.c.h.b16 %v458
          %v630 = vunpack.c.l.b16 %v459
          %v631 = vunpack.c.h.b16 %v459
          %v632 = vunpack.c.l.b16 %v460
          %v633 = vunpack.c.h.b16 %v460
          %v634 = vunpack.c.l.b16 %v461
          %v635 = vunpack.c.h.b16 %v461
          %v636 = vunpack.c.l.b16 %v462
          %v637 = vunpack.c.h.b16 %v462
          %v638 = vunpack.c.l.b16 %v463
          %v639 = vunpack.c.h.b16 %v463
          %v640 = vunpack.c.l.b16 %v464
          %v641 = vunpack.c.h.b16 %v464
          %v642 = vunpack.c.l.b16 %v465
          %v643 = vunpack.c.h.b16 %v465
          %v644 = vunpack.c.l.b16 %v466
          %v645 = vunpack.c.h.b16 %v466
          %v646 = vunpack.c.l.b16 %v467
          %v647 = vunpack.c.h.b16 %v467
          %v648 = vunpack.c.l.b16 %v468
          %v649 = vunpack.c.h.b16 %v468
          %v650 = vunpack.c.l.b16 %v469
          %v651 = vunpack.c.h.b16 %v469
          %v652 = vunpack.c.l.b16 %v470
          %v653 = vunpack.c.h.b16 %v470
          %v654 = vunpack.c.l.b16 %v471
          %v655 = vunpack.c.h.b16 %v471
          %v656 = vunpack.c.l.b16 %v472
          %v657 = vunpack.c.h.b16 %v472
          %v658 = vunpack.c.l.b16 %v473
          %v659 = vunpack.c.h.b16 %v473
          %v660 = vunpack.c.l.b16 %v474
          %v661 = vunpack.c.h.b16 %v474
          %v662 = vunpack.c.l.b16 %v475
          %v663 = vunpack.c.h.b16 %v475
          %v664 = vunpack.c.l.b16 %v476
          %v665 = vunpack.c.h.b16 %v476
          %v666 = vunpack.c.l.b16 %v477
          %v667 = vunpack.c.h.b16 %v477
          %v668 = vunpack.c.l.b16 %v478
          %v669 = vunpack.c.h.b16 %v478
          %v670 = vunpack.c.l.b16 %v479
          %v671 = vunpack.c.h.b16 %v479
          %v672 = vunpack.c.l.b16 %v480
          %v673 = vunpack.c.h.b16 %v480
          %v674 = vunpack.c.l.b16 %v481
          %v675 = vunpack.c.h.b16 %v481
          %v676 = vunpack.c.l.b16 %v482
          %v677 = vunpack.c.h.b16 %v482
          %v678 = vunpack.c.l.b16 %v483
          %v679 = vunpack.c.h.b16 %v483
          %v680 = vunpack.c.l.b16 %v484
          %v681 = vunpack.c.h.b16 %v484
          %v682 = vunpack.c.l.b16 %v485
          %v683 = vunpack.c.h.b16 %v485
          %v684 = vunpack.c.l.b16 %v486
          %v685 = vunpack.c.h.b16 %v486
          %v686 = vunpack.c.l.b16 %v487
          %v687 = vunpack.c.h.b16 %v487
          %v688 = vunpack.c.l.b16 %v488
          %v689 = vunpack.c.h.b16 %v488
          %v690 = vunpack.c.l.b16 %v489
          %v691 = vunpack.c.h.b16 %v489
          %v692 = vunpack.c.l.b16 %v490
          %v693 = vunpack.c.h.b16 %v490
          %v694 = vunpack.c.l.b16 %v491
          %v695 = vunpack.c.h.b16 %v491
          %v696 = vunpack.c.l.b16 %v492
          %v697 = vunpack.c.h.b16 %v492
          %v698 = vunpack.c.l.b16 %v493
          %v699 = vunpack.c.h.b16 %v493
          %v700 = vunpack.c.l.b16 %v494
          %v701 = vunpack.c.h.b16 %v494
          %v702 = vunpack.c.l.b16 %v495
          %v703 = vunpack.c.h.b16 %v495
          %v704 = vunpack.c.l.b16 %v496
          %v705 = vunpack.c.h.b16 %v496
          %v706 = vunpack.c.l.b16 %v497
          %v707 = vunpack.c.h.b16 %v497
          %v708 = vpack.c.b16 %v588, %v580
          %v709 = vpack.c.b16 %v589, %v581
          %v710 = vpack.c.b16 %v590, %v582
          %v711 = vpack.c.b16 %v591, %v583
          %v712 = vpack.c.b16 %v592, %v584
          %v713 = vpack.c.b16 %v593, %v585
          %v714 = vpack.c.b16 %v594, %v586
          %v715 = vpack.c.b16 %v595, %v587
          %v716 = vpack.c.b16 %v604, %v596
          %v717 = vpack.c.b16 %v605, %v597
          %v718 = vpack.c.b16 %v606, %v598
          %v719 = vpack.c.b16 %v607, %v599
          %v720 = vpack.c.b16 %v608, %v600
          %v721 = vpack.c.b16 %v609, %v601
          %v722 = vpack.c.b16 %v610, %v602
          %v723 = vpack.c.b16 %v611, %v603
          %v724 = vpack.c.b16 %v620, %v612
          %v725 = vpack.c.b16 %v621, %v613
          %v726 = vpack.c.b16 %v622, %v614
          %v727 = vpack.c.b16 %v623, %v615
          %v728 = vpack.c.b16 %v624, %v616
          %v729 = vpack.c.b16 %v625, %v617
          %v730 = vpack.c.b16 %v626, %v618
          %v731 = vpack.c.b16 %v627, %v619
          %v732 = vpack.c.b16 %v636, %v628
          %v733 = vpack.c.b16 %v637, %v629
          %v734 = vpack.c.b16 %v638, %v630
          %v735 = vpack.c.b16 %v639, %v631
          %v736 = vpack.c.b16 %v640, %v632
          %v737 = vpack.c.b16 %v641, %v633
          %v738 = vpack.c.b16 %v642, %v634
          %v739 = vpack.c.b16 %v643, %v635
          %v740 = vpack.c.b16 %v652, %v644
          %v741 = vpack.c.b16 %v653, %v645
          %v742 = vpack.c.b16 %v654, %v646
          %v743 = vpack.c.b16 %v655, %v647
          %v744 = vpack.c.b16 %v656, %v648
          %v745 = vpack.c.b16 %v657, %v649
          %v746 = vpack.c.b16 %v658, %v650
          %v747 = vpack.c.b16 %v659, %v651
          %v748 = vpack.c.b16 %v668, %v660
          %v749 = vpack.c.b16 %v669, %v661
          %v750 = vpack.c.b16 %v670, %v662
          %v751 = vpack.c.b16 %v671, %v663
          %v752 = vpack.c.b16 %v672, %v664
          %v753 = vpack.c.b16 %v673, %v665
          %v754 = vpack.c.b16 %v674, %v666
          %v755 = vpack.c.b16 %v675, %v667
          %v756 = vpack.c.b16 %v684, %v676
          %v757 = vpack.c.b16 %v685, %v677
          %v758 = vpack.c.b16 %v686, %v678
          %v759 = vpack.c.b16 %v687, %v679
          %v760 = vpack.c.b16 %v688, %v680
          %v761 = vpack.c.b16 %v689, %v681
          %v762 = vpack.c.b16 %v690, %v682
          %v763 = vpack.c.b16 %v691, %v683
          %v764 = vpack.c.b16 %v700, %v692
          %v765 = vpack.c.b16 %v701, %v693
          %v766 = vpack.c.b16 %v702, %v694
          %v767 = vpack.c.b16 %v703, %v695
          %v768 = vpack.c.b16 %v704, %v696
          %v769 = vpack.c.b16 %v705, %v697
          %v770 = vpack.c.b16 %v706, %v698
          %v771 = vpack.c.b16 %v707, %v699
          %836 = vmatpush.bf16.msra.mxu0 %v764
          %837 = vmatpush.bf16.msra.mxu0 %v756
          %838 = vmatpush.bf16.msra.mxu0 %v748
          %839 = vmatpush.bf16.msra.mxu0 %v740
          %840 = vmatpush.bf16.msra.mxu0 %v732
          %841 = vmatpush.bf16.msra.mxu0 %v724
          %842 = vmatpush.bf16.msra.mxu0 %v716
          %843 = vmatpush.bf16.msra.mxu0 %v708
          %844 = vmatmul.bf16.gmra.mxu0 %v433
          %v845 = vpop.f32.mrf.mxu0
          %v846 = vadd.f32 %v500, %v845
          %v847 = vpop.f32.mrf.mxu0
          %848 = vdwg.mxu0
          %849 = vmatpush.bf16.msra.mxu0 %v765
          %850 = vmatpush.bf16.msra.mxu0 %v757
          %851 = vmatpush.bf16.msra.mxu0 %v749
          %852 = vmatpush.bf16.msra.mxu0 %v741
          %853 = vmatpush.bf16.msra.mxu0 %v733
          %854 = vmatpush.bf16.msra.mxu0 %v725
          %855 = vmatpush.bf16.msra.mxu0 %v717
          %856 = vmatpush.bf16.msra.mxu0 %v709
          %857 = vmatmul.bf16.gmra.mxu0 %v433
          %v858 = vpop.f32.mrf.mxu0
          %v859 = vadd.f32 %v501, %v858
          %v860 = vpop.f32.mrf.mxu0
          %861 = vdwg.mxu0
          %862 = vmatpush.bf16.msra.mxu0 %v766
          %863 = vmatpush.bf16.msra.mxu0 %v758
          %864 = vmatpush.bf16.msra.mxu0 %v750
          %865 = vmatpush.bf16.msra.mxu0 %v742
          %866 = vmatpush.bf16.msra.mxu0 %v734
          %867 = vmatpush.bf16.msra.mxu0 %v726
          %868 = vmatpush.bf16.msra.mxu0 %v718
          %869 = vmatpush.bf16.msra.mxu0 %v710
          %870 = vmatmul.bf16.gmra.mxu0 %v433
          %v871 = vpop.f32.mrf.mxu0
          %v872 = vadd.f32 %v502, %v871
          %v873 = vpop.f32.mrf.mxu0
          %874 = vdwg.mxu0
          %875 = vmatpush.bf16.msra.mxu0 %v767
          %876 = vmatpush.bf16.msra.mxu0 %v759
          %877 = vmatpush.bf16.msra.mxu0 %v751
          %878 = vmatpush.bf16.msra.mxu0 %v743
          %879 = vmatpush.bf16.msra.mxu0 %v735
          %880 = vmatpush.bf16.msra.mxu0 %v727
          %881 = vmatpush.bf16.msra.mxu0 %v719
          %882 = vmatpush.bf16.msra.mxu0 %v711
          %883 = vmatmul.bf16.gmra.mxu0 %v433
          %v884 = vpop.f32.mrf.mxu0
          %v885 = vadd.f32 %v503, %v884
          %v886 = vpop.f32.mrf.mxu0
          %887 = vdwg.mxu0
          %888 = vmatpush.bf16.msra.mxu0 %v768
          %889 = vmatpush.bf16.msra.mxu0 %v760
          %890 = vmatpush.bf16.msra.mxu0 %v752
          %891 = vmatpush.bf16.msra.mxu0 %v744
          %892 = vmatpush.bf16.msra.mxu0 %v736
          %893 = vmatpush.bf16.msra.mxu0 %v728
          %894 = vmatpush.bf16.msra.mxu0 %v720
          %895 = vmatpush.bf16.msra.mxu0 %v712
          %896 = vmatmul.bf16.gmra.mxu0 %v433
          %v897 = vpop.f32.mrf.mxu0
          %v898 = vadd.f32 %v504, %v897
          %v899 = vpop.f32.mrf.mxu0
          %900 = vdwg.mxu0
          %901 = vmatpush.bf16.msra.mxu0 %v769
          %902 = vmatpush.bf16.msra.mxu0 %v761
          %903 = vmatpush.bf16.msra.mxu0 %v753
          %904 = vmatpush.bf16.msra.mxu0 %v745
          %905 = vmatpush.bf16.msra.mxu0 %v737
          %906 = vmatpush.bf16.msra.mxu0 %v729
          %907 = vmatpush.bf16.msra.mxu0 %v721
          %908 = vmatpush.bf16.msra.mxu0 %v713
          %909 = vmatmul.bf16.gmra.mxu0 %v433
          %v910 = vpop.f32.mrf.mxu0
          %v911 = vadd.f32 %v505, %v910
          %v912 = vpop.f32.mrf.mxu0
          %913 = vdwg.mxu0
          %914 = vmatpush.bf16.msra.mxu0 %v770
          %915 = vmatpush.bf16.msra.mxu0 %v762
          %916 = vmatpush.bf16.msra.mxu0 %v754
          %917 = vmatpush.bf16.msra.mxu0 %v746
          %918 = vmatpush.bf16.msra.mxu0 %v738
          %919 = vmatpush.bf16.msra.mxu0 %v730
          %920 = vmatpush.bf16.msra.mxu0 %v722
          %921 = vmatpush.bf16.msra.mxu0 %v714
          %922 = vmatmul.bf16.gmra.mxu0 %v433
          %v923 = vpop.f32.mrf.mxu0
          %v924 = vadd.f32 %v506, %v923
          %v925 = vpop.f32.mrf.mxu0
          %926 = vdwg.mxu0
          %927 = vmatpush.bf16.msra.mxu0 %v771
          %928 = vmatpush.bf16.msra.mxu0 %v763
          %929 = vmatpush.bf16.msra.mxu0 %v755
          %930 = vmatpush.bf16.msra.mxu0 %v747
          %931 = vmatpush.bf16.msra.mxu0 %v739
          %932 = vmatpush.bf16.msra.mxu0 %v731
          %933 = vmatpush.bf16.msra.mxu0 %v723
          %934 = vmatpush.bf16.msra.mxu0 %v715
          %935 = vmatmul.bf16.gmra.mxu0 %v433
          %v936 = vpop.f32.mrf.mxu0
          %v937 = vadd.f32 %v507, %v936
          %v938 = vpop.f32.mrf.mxu0
          %939 = vdwg.mxu0
          %v940 = vmax.f32 %v846, 0.0
          %v941 = vmax.f32 %v859, 0.0
          %v942 = vmax.f32 %v872, 0.0
          %v943 = vmax.f32 %v885, 0.0
          %v944 = vmax.f32 %v898, 0.0
          %v945 = vmax.f32 %v911, 0.0
          %v946 = vmax.f32 %v924, 0.0
          %v947 = vmax.f32 %v937, 0.0
          %v948 = vpack.c.bf16 %v941, %v940
          %v949 = vpack.c.bf16 %v943, %v942
          %v950 = vpack.c.bf16 %v945, %v944
          %v951 = vpack.c.bf16 %v947, %v946
          %952 = vst [vmem:[#allocation2] sm:$0xff] %v948
          %953 = vst [vmem:[#allocation2 + $0x8] sm:$0xff] %v949
          %954 = vst [vmem:[#allocation2 + $0x10] sm:$0xff] %v950
          %955 = vst [vmem:[#allocation2 + $0x18] sm:$0xff] %v951
          %956 = vst [vmem:[#allocation3] sm:$0xff] 0.0
        $region80: #{tpu_custom_call.1} parent=47 // pred_fallthru
          _
        %v957 = vld [vmem:[#allocation2] sm:$0xff]
        %v958 = vld [vmem:[#allocation2 + $0x8] sm:$0xff]
        %v959 = vld [vmem:[#allocation2 + $0x10] sm:$0xff]
        %v960 = vld [vmem:[#allocation2 + $0x18] sm:$0xff]
        %v961 = vld [vmem:[%s363] sm:$0xff]
        %v962 = vld [vmem:[%s363 + $0x8] sm:$0xff]
        %v963 = vld [vmem:[%s363 + $0x10] sm:$0xff]
        %v964 = vld [vmem:[%s363 + $0x18] sm:$0xff]
        %v965 = vld [vmem:[%s363 + $0x20] sm:$0xff]
        %v966 = vld [vmem:[%s363 + $0x28] sm:$0xff]
        %v967 = vld [vmem:[%s363 + $0x30] sm:$0xff]
        %v968 = vld [vmem:[%s363 + $0x38] sm:$0xff]
        %v969 = vld [vmem:[%s363 + $0x40] sm:$0xff]
        %v970 = vld [vmem:[%s363 + $0x48] sm:$0xff]
        %v971 = vld [vmem:[%s363 + $0x50] sm:$0xff]
        %v972 = vld [vmem:[%s363 + $0x58] sm:$0xff]
        %v973 = vld [vmem:[%s363 + $0x60] sm:$0xff]
        %v974 = vld [vmem:[%s363 + $0x68] sm:$0xff]
        %v975 = vld [vmem:[%s363 + $0x70] sm:$0xff]
        %v976 = vld [vmem:[%s363 + $0x78] sm:$0xff]
        %v977 = vld [vmem:[%s363 + $0x80] sm:$0xff]
        %v978 = vld [vmem:[%s363 + $0x88] sm:$0xff]
        %v979 = vld [vmem:[%s363 + $0x90] sm:$0xff]
        %v980 = vld [vmem:[%s363 + $0x98] sm:$0xff]
        %v981 = vld [vmem:[%s363 + $0xa0] sm:$0xff]
        %v982 = vld [vmem:[%s363 + $0xa8] sm:$0xff]
        %v983 = vld [vmem:[%s363 + $0xb0] sm:$0xff]
        %v984 = vld [vmem:[%s363 + $0xb8] sm:$0xff]
        %v985 = vld [vmem:[%s363 + $0xc0] sm:$0xff]
        %v986 = vld [vmem:[%s363 + $0xc8] sm:$0xff]
        %v987 = vld [vmem:[%s363 + $0xd0] sm:$0xff]
        %v988 = vld [vmem:[%s363 + $0xd8] sm:$0xff]
        %v989 = vld [vmem:[%s363 + $0xe0] sm:$0xff]
        %v990 = vld [vmem:[%s363 + $0xe8] sm:$0xff]
        %v991 = vld [vmem:[%s363 + $0xf0] sm:$0xff]
        %v992 = vld [vmem:[%s363 + $0xf8] sm:$0xff]
        %v993 = vld [vmem:[%s363 + $0x100] sm:$0xff]
        %v994 = vld [vmem:[%s363 + $0x108] sm:$0xff]
        %v995 = vld [vmem:[%s363 + $0x110] sm:$0xff]
        %v996 = vld [vmem:[%s363 + $0x118] sm:$0xff]
        %v997 = vld [vmem:[%s363 + $0x120] sm:$0xff]
        %v998 = vld [vmem:[%s363 + $0x128] sm:$0xff]
        %v999 = vld [vmem:[%s363 + $0x130] sm:$0xff]
        %v1000 = vld [vmem:[%s363 + $0x138] sm:$0xff]
        %v1001 = vld [vmem:[%s363 + $0x140] sm:$0xff]
        %v1002 = vld [vmem:[%s363 + $0x148] sm:$0xff]
        %v1003 = vld [vmem:[%s363 + $0x150] sm:$0xff]
        %v1004 = vld [vmem:[%s363 + $0x158] sm:$0xff]
        %v1005 = vld [vmem:[%s363 + $0x160] sm:$0xff]
        %v1006 = vld [vmem:[%s363 + $0x168] sm:$0xff]
        %v1007 = vld [vmem:[%s363 + $0x170] sm:$0xff]
        %v1008 = vld [vmem:[%s363 + $0x178] sm:$0xff]
        %v1009 = vld [vmem:[%s363 + $0x180] sm:$0xff]
        %v1010 = vld [vmem:[%s363 + $0x188] sm:$0xff]
        %v1011 = vld [vmem:[%s363 + $0x190] sm:$0xff]
        %v1012 = vld [vmem:[%s363 + $0x198] sm:$0xff]
        %v1013 = vld [vmem:[%s363 + $0x1a0] sm:$0xff]
        %v1014 = vld [vmem:[%s363 + $0x1a8] sm:$0xff]
        %v1015 = vld [vmem:[%s363 + $0x1b0] sm:$0xff]
        %v1016 = vld [vmem:[%s363 + $0x1b8] sm:$0xff]
        %v1017 = vld [vmem:[%s363 + $0x1c0] sm:$0xff]
        %v1018 = vld [vmem:[%s363 + $0x1c8] sm:$0xff]
        %v1019 = vld [vmem:[%s363 + $0x1d0] sm:$0xff]
        %v1020 = vld [vmem:[%s363 + $0x1d8] sm:$0xff]
        %v1021 = vld [vmem:[%s363 + $0x1e0] sm:$0xff]
        %v1022 = vld [vmem:[%s363 + $0x1e8] sm:$0xff]
        %v1023 = vld [vmem:[%s363 + $0x1f0] sm:$0xff]
        %v1024 = vld [vmem:[%s363 + $0x1f8] sm:$0xff]
        %v1025 = vld [vmem:[%s363 + $0x200] sm:$0xff]
        %v1026 = vld [vmem:[%s363 + $0x208] sm:$0xff]
        %v1027 = vld [vmem:[%s363 + $0x210] sm:$0xff]
        %v1028 = vld [vmem:[%s363 + $0x218] sm:$0xff]
        %v1029 = vld [vmem:[%s363 + $0x220] sm:$0xff]
        %v1030 = vld [vmem:[%s363 + $0x228] sm:$0xff]
        %v1031 = vld [vmem:[%s363 + $0x230] sm:$0xff]
        %v1032 = vld [vmem:[%s363 + $0x238] sm:$0xff]
        %v1033 = vld [vmem:[%s363 + $0x240] sm:$0xff]
        %v1034 = vld [vmem:[%s363 + $0x248] sm:$0xff]
        %v1035 = vld [vmem:[%s363 + $0x250] sm:$0xff]
        %v1036 = vld [vmem:[%s363 + $0x258] sm:$0xff]
        %v1037 = vld [vmem:[%s363 + $0x260] sm:$0xff]
        %v1038 = vld [vmem:[%s363 + $0x268] sm:$0xff]
        %v1039 = vld [vmem:[%s363 + $0x270] sm:$0xff]
        %v1040 = vld [vmem:[%s363 + $0x278] sm:$0xff]
        %v1041 = vld [vmem:[%s363 + $0x280] sm:$0xff]
        %v1042 = vld [vmem:[%s363 + $0x288] sm:$0xff]
        %v1043 = vld [vmem:[%s363 + $0x290] sm:$0xff]
        %v1044 = vld [vmem:[%s363 + $0x298] sm:$0xff]
        %v1045 = vld [vmem:[%s363 + $0x2a0] sm:$0xff]
        %v1046 = vld [vmem:[%s363 + $0x2a8] sm:$0xff]
        %v1047 = vld [vmem:[%s363 + $0x2b0] sm:$0xff]
        %v1048 = vld [vmem:[%s363 + $0x2b8] sm:$0xff]
        %v1049 = vld [vmem:[%s363 + $0x2c0] sm:$0xff]
        %v1050 = vld [vmem:[%s363 + $0x2c8] sm:$0xff]
        %v1051 = vld [vmem:[%s363 + $0x2d0] sm:$0xff]
        %v1052 = vld [vmem:[%s363 + $0x2d8] sm:$0xff]
        %v1053 = vld [vmem:[%s363 + $0x2e0] sm:$0xff]
        %v1054 = vld [vmem:[%s363 + $0x2e8] sm:$0xff]
        %v1055 = vld [vmem:[%s363 + $0x2f0] sm:$0xff]
        %v1056 = vld [vmem:[%s363 + $0x2f8] sm:$0xff]
        %v1057 = vld [vmem:[%s363 + $0x300] sm:$0xff]
        %v1058 = vld [vmem:[%s363 + $0x308] sm:$0xff]
        %v1059 = vld [vmem:[%s363 + $0x310] sm:$0xff]
        %v1060 = vld [vmem:[%s363 + $0x318] sm:$0xff]
        %v1061 = vld [vmem:[%s363 + $0x320] sm:$0xff]
        %v1062 = vld [vmem:[%s363 + $0x328] sm:$0xff]
        %v1063 = vld [vmem:[%s363 + $0x330] sm:$0xff]
        %v1064 = vld [vmem:[%s363 + $0x338] sm:$0xff]
        %v1065 = vld [vmem:[%s363 + $0x340] sm:$0xff]
        %v1066 = vld [vmem:[%s363 + $0x348] sm:$0xff]
        %v1067 = vld [vmem:[%s363 + $0x350] sm:$0xff]
        %v1068 = vld [vmem:[%s363 + $0x358] sm:$0xff]
        %v1069 = vld [vmem:[%s363 + $0x360] sm:$0xff]
        %v1070 = vld [vmem:[%s363 + $0x368] sm:$0xff]
        %v1071 = vld [vmem:[%s363 + $0x370] sm:$0xff]
        %v1072 = vld [vmem:[%s363 + $0x378] sm:$0xff]
        %v1073 = vld [vmem:[%s363 + $0x380] sm:$0xff]
        %v1074 = vld [vmem:[%s363 + $0x388] sm:$0xff]
        %v1075 = vld [vmem:[%s363 + $0x390] sm:$0xff]
        %v1076 = vld [vmem:[%s363 + $0x398] sm:$0xff]
        %v1077 = vld [vmem:[%s363 + $0x3a0] sm:$0xff]
        %v1078 = vld [vmem:[%s363 + $0x3a8] sm:$0xff]
        %v1079 = vld [vmem:[%s363 + $0x3b0] sm:$0xff]
        %v1080 = vld [vmem:[%s363 + $0x3b8] sm:$0xff]
        %v1081 = vld [vmem:[%s363 + $0x3c0] sm:$0xff]
        %v1082 = vld [vmem:[%s363 + $0x3c8] sm:$0xff]
        %v1083 = vld [vmem:[%s363 + $0x3d0] sm:$0xff]
        %v1084 = vld [vmem:[%s363 + $0x3d8] sm:$0xff]
        %v1085 = vld [vmem:[%s363 + $0x3e0] sm:$0xff]
        %v1086 = vld [vmem:[%s363 + $0x3e8] sm:$0xff]
        %v1087 = vld [vmem:[%s363 + $0x3f0] sm:$0xff]
        %v1088 = vld [vmem:[%s363 + $0x3f8] sm:$0xff]
        %v1089 = vld [vmem:[%s363 + $0x400] sm:$0xff]
        %v1090 = vld [vmem:[%s363 + $0x408] sm:$0xff]
        %v1091 = vld [vmem:[%s363 + $0x410] sm:$0xff]
        %v1092 = vld [vmem:[%s363 + $0x418] sm:$0xff]
        %v1093 = vld [vmem:[%s363 + $0x420] sm:$0xff]
        %v1094 = vld [vmem:[%s363 + $0x428] sm:$0xff]
        %v1095 = vld [vmem:[%s363 + $0x430] sm:$0xff]
        %v1096 = vld [vmem:[%s363 + $0x438] sm:$0xff]
        %v1097 = vld [vmem:[%s363 + $0x440] sm:$0xff]
        %v1098 = vld [vmem:[%s363 + $0x448] sm:$0xff]
        %v1099 = vld [vmem:[%s363 + $0x450] sm:$0xff]
        %v1100 = vld [vmem:[%s363 + $0x458] sm:$0xff]
        %v1101 = vld [vmem:[%s363 + $0x460] sm:$0xff]
        %v1102 = vld [vmem:[%s363 + $0x468] sm:$0xff]
        %v1103 = vld [vmem:[%s363 + $0x470] sm:$0xff]
        %v1104 = vld [vmem:[%s363 + $0x478] sm:$0xff]
        %v1105 = vld [vmem:[%s363 + $0x480] sm:$0xff]
        %v1106 = vld [vmem:[%s363 + $0x488] sm:$0xff]
        %v1107 = vld [vmem:[%s363 + $0x490] sm:$0xff]
        %v1108 = vld [vmem:[%s363 + $0x498] sm:$0xff]
        %v1109 = vld [vmem:[%s363 + $0x4a0] sm:$0xff]
        %v1110 = vld [vmem:[%s363 + $0x4a8] sm:$0xff]
        %v1111 = vld [vmem:[%s363 + $0x4b0] sm:$0xff]
        %v1112 = vld [vmem:[%s363 + $0x4b8] sm:$0xff]
        %v1113 = vld [vmem:[%s363 + $0x4c0] sm:$0xff]
        %v1114 = vld [vmem:[%s363 + $0x4c8] sm:$0xff]
        %v1115 = vld [vmem:[%s363 + $0x4d0] sm:$0xff]
        %v1116 = vld [vmem:[%s363 + $0x4d8] sm:$0xff]
        %v1117 = vld [vmem:[%s363 + $0x4e0] sm:$0xff]
        %v1118 = vld [vmem:[%s363 + $0x4e8] sm:$0xff]
        %v1119 = vld [vmem:[%s363 + $0x4f0] sm:$0xff]
        %v1120 = vld [vmem:[%s363 + $0x4f8] sm:$0xff]
        %v1121 = vld [vmem:[%s363 + $0x500] sm:$0xff]
        %v1122 = vld [vmem:[%s363 + $0x508] sm:$0xff]
        %v1123 = vld [vmem:[%s363 + $0x510] sm:$0xff]
        %v1124 = vld [vmem:[%s363 + $0x518] sm:$0xff]
        %v1125 = vld [vmem:[%s363 + $0x520] sm:$0xff]
        %v1126 = vld [vmem:[%s363 + $0x528] sm:$0xff]
        %v1127 = vld [vmem:[%s363 + $0x530] sm:$0xff]
        %v1128 = vld [vmem:[%s363 + $0x538] sm:$0xff]
        %v1129 = vld [vmem:[%s363 + $0x540] sm:$0xff]
        %v1130 = vld [vmem:[%s363 + $0x548] sm:$0xff]
        %v1131 = vld [vmem:[%s363 + $0x550] sm:$0xff]
        %v1132 = vld [vmem:[%s363 + $0x558] sm:$0xff]
        %v1133 = vld [vmem:[%s363 + $0x560] sm:$0xff]
        %v1134 = vld [vmem:[%s363 + $0x568] sm:$0xff]
        %v1135 = vld [vmem:[%s363 + $0x570] sm:$0xff]
        %v1136 = vld [vmem:[%s363 + $0x578] sm:$0xff]
        %v1137 = vld [vmem:[%s363 + $0x580] sm:$0xff]
        %v1138 = vld [vmem:[%s363 + $0x588] sm:$0xff]
        %v1139 = vld [vmem:[%s363 + $0x590] sm:$0xff]
        %v1140 = vld [vmem:[%s363 + $0x598] sm:$0xff]
        %v1141 = vld [vmem:[%s363 + $0x5a0] sm:$0xff]
        %v1142 = vld [vmem:[%s363 + $0x5a8] sm:$0xff]
        %v1143 = vld [vmem:[%s363 + $0x5b0] sm:$0xff]
        %v1144 = vld [vmem:[%s363 + $0x5b8] sm:$0xff]
        %v1145 = vld [vmem:[%s363 + $0x5c0] sm:$0xff]
        %v1146 = vld [vmem:[%s363 + $0x5c8] sm:$0xff]
        %v1147 = vld [vmem:[%s363 + $0x5d0] sm:$0xff]
        %v1148 = vld [vmem:[%s363 + $0x5d8] sm:$0xff]
        %v1149 = vld [vmem:[%s363 + $0x5e0] sm:$0xff]
        %v1150 = vld [vmem:[%s363 + $0x5e8] sm:$0xff]
        %v1151 = vld [vmem:[%s363 + $0x5f0] sm:$0xff]
        %v1152 = vld [vmem:[%s363 + $0x5f8] sm:$0xff]
        %v1153 = vld [vmem:[%s363 + $0x600] sm:$0xff]
        %v1154 = vld [vmem:[%s363 + $0x608] sm:$0xff]
        %v1155 = vld [vmem:[%s363 + $0x610] sm:$0xff]
        %v1156 = vld [vmem:[%s363 + $0x618] sm:$0xff]
        %v1157 = vld [vmem:[%s363 + $0x620] sm:$0xff]
        %v1158 = vld [vmem:[%s363 + $0x628] sm:$0xff]
        %v1159 = vld [vmem:[%s363 + $0x630] sm:$0xff]
        %v1160 = vld [vmem:[%s363 + $0x638] sm:$0xff]
        %v1161 = vld [vmem:[%s363 + $0x640] sm:$0xff]
        %v1162 = vld [vmem:[%s363 + $0x648] sm:$0xff]
        %v1163 = vld [vmem:[%s363 + $0x650] sm:$0xff]
        %v1164 = vld [vmem:[%s363 + $0x658] sm:$0xff]
        %v1165 = vld [vmem:[%s363 + $0x660] sm:$0xff]
        %v1166 = vld [vmem:[%s363 + $0x668] sm:$0xff]
        %v1167 = vld [vmem:[%s363 + $0x670] sm:$0xff]
        %v1168 = vld [vmem:[%s363 + $0x678] sm:$0xff]
        %v1169 = vld [vmem:[%s363 + $0x680] sm:$0xff]
        %v1170 = vld [vmem:[%s363 + $0x688] sm:$0xff]
        %v1171 = vld [vmem:[%s363 + $0x690] sm:$0xff]
        %v1172 = vld [vmem:[%s363 + $0x698] sm:$0xff]
        %v1173 = vld [vmem:[%s363 + $0x6a0] sm:$0xff]
        %v1174 = vld [vmem:[%s363 + $0x6a8] sm:$0xff]
        %v1175 = vld [vmem:[%s363 + $0x6b0] sm:$0xff]
        %v1176 = vld [vmem:[%s363 + $0x6b8] sm:$0xff]
        %v1177 = vld [vmem:[%s363 + $0x6c0] sm:$0xff]
        %v1178 = vld [vmem:[%s363 + $0x6c8] sm:$0xff]
        %v1179 = vld [vmem:[%s363 + $0x6d0] sm:$0xff]
        %v1180 = vld [vmem:[%s363 + $0x6d8] sm:$0xff]
        %v1181 = vld [vmem:[%s363 + $0x6e0] sm:$0xff]
        %v1182 = vld [vmem:[%s363 + $0x6e8] sm:$0xff]
        %v1183 = vld [vmem:[%s363 + $0x6f0] sm:$0xff]
        %v1184 = vld [vmem:[%s363 + $0x6f8] sm:$0xff]
        %v1185 = vld [vmem:[%s363 + $0x700] sm:$0xff]
        %v1186 = vld [vmem:[%s363 + $0x708] sm:$0xff]
        %v1187 = vld [vmem:[%s363 + $0x710] sm:$0xff]
        %v1188 = vld [vmem:[%s363 + $0x718] sm:$0xff]
        %v1189 = vld [vmem:[%s363 + $0x720] sm:$0xff]
        %v1190 = vld [vmem:[%s363 + $0x728] sm:$0xff]
        %v1191 = vld [vmem:[%s363 + $0x730] sm:$0xff]
        %v1192 = vld [vmem:[%s363 + $0x738] sm:$0xff]
        %v1193 = vld [vmem:[%s363 + $0x740] sm:$0xff]
        %v1194 = vld [vmem:[%s363 + $0x748] sm:$0xff]
        %v1195 = vld [vmem:[%s363 + $0x750] sm:$0xff]
        %v1196 = vld [vmem:[%s363 + $0x758] sm:$0xff]
        %v1197 = vld [vmem:[%s363 + $0x760] sm:$0xff]
        %v1198 = vld [vmem:[%s363 + $0x768] sm:$0xff]
        %v1199 = vld [vmem:[%s363 + $0x770] sm:$0xff]
        %v1200 = vld [vmem:[%s363 + $0x778] sm:$0xff]
        %v1201 = vld [vmem:[%s363 + $0x780] sm:$0xff]
        %v1202 = vld [vmem:[%s363 + $0x788] sm:$0xff]
        %v1203 = vld [vmem:[%s363 + $0x790] sm:$0xff]
        %v1204 = vld [vmem:[%s363 + $0x798] sm:$0xff]
        %v1205 = vld [vmem:[%s363 + $0x7a0] sm:$0xff]
        %v1206 = vld [vmem:[%s363 + $0x7a8] sm:$0xff]
        %v1207 = vld [vmem:[%s363 + $0x7b0] sm:$0xff]
        %v1208 = vld [vmem:[%s363 + $0x7b8] sm:$0xff]
        %v1209 = vld [vmem:[%s363 + $0x7c0] sm:$0xff]
        %v1210 = vld [vmem:[%s363 + $0x7c8] sm:$0xff]
        %v1211 = vld [vmem:[%s363 + $0x7d0] sm:$0xff]
        %v1212 = vld [vmem:[%s363 + $0x7d8] sm:$0xff]
        %v1213 = vld [vmem:[%s363 + $0x7e0] sm:$0xff]
        %v1214 = vld [vmem:[%s363 + $0x7e8] sm:$0xff]
        %v1215 = vld [vmem:[%s363 + $0x7f0] sm:$0xff]
        %v1216 = vld [vmem:[%s363 + $0x7f8] sm:$0xff]
        %v1217 = vld [vmem:[%s373] sm:$0xf]
        %v1219 = vperm.slane %v1217, 0
        %v1220 = vperm.slane %v1217, 1
        %v1221 = vperm.slane %v1217, 2
        %v1222 = vperm.slane %v1217, 3
        %v1231 = vunpack.c.l.b16 %v957
        %v1232 = vunpack.c.h.b16 %v957
        %v1233 = vunpack.c.l.b16 %v958
        %v1234 = vunpack.c.h.b16 %v958
        %v1235 = vunpack.c.l.b16 %v959
        %v1236 = vunpack.c.h.b16 %v959
        %v1237 = vunpack.c.l.b16 %v960
        %v1238 = vunpack.c.h.b16 %v960
        %v1239 = vpack.c.b16 %v1231, %v1231
        %v1240 = vpack.c.b16 %v1232, %v1232
        %v1241 = vpack.c.b16 %v1233, %v1233
        %v1242 = vpack.c.b16 %v1234, %v1234
        %v1243 = vpack.c.b16 %v1235, %v1235
        %v1244 = vpack.c.b16 %v1236, %v1236
        %v1245 = vpack.c.b16 %v1237, %v1237
        %v1246 = vpack.c.b16 %v1238, %v1238
        %v1511 = vunpack.c.l.b16 %v961
        %v1512 = vunpack.c.h.b16 %v961
        %v1513 = vunpack.c.l.b16 %v962
        %v1514 = vunpack.c.h.b16 %v962
        %v1515 = vunpack.c.l.b16 %v963
        %v1516 = vunpack.c.h.b16 %v963
        %v1517 = vunpack.c.l.b16 %v964
        %v1518 = vunpack.c.h.b16 %v964
        %v1519 = vunpack.c.l.b16 %v965
        %v1520 = vunpack.c.h.b16 %v965
        %v1521 = vunpack.c.l.b16 %v966
        %v1522 = vunpack.c.h.b16 %v966
        %v1523 = vunpack.c.l.b16 %v967
        %v1524 = vunpack.c.h.b16 %v967
        %v1525 = vunpack.c.l.b16 %v968
        %v1526 = vunpack.c.h.b16 %v968
        %v1527 = vunpack.c.l.b16 %v969
        %v1528 = vunpack.c.h.b16 %v969
        %v1529 = vunpack.c.l.b16 %v970
        %v1530 = vunpack.c.h.b16 %v970
        %v1531 = vunpack.c.l.b16 %v971
        %v1532 = vunpack.c.h.b16 %v971
        %v1533 = vunpack.c.l.b16 %v972
        %v1534 = vunpack.c.h.b16 %v972
        %v1535 = vunpack.c.l.b16 %v973
        %v1536 = vunpack.c.h.b16 %v973
        %v1537 = vunpack.c.l.b16 %v974
        %v1538 = vunpack.c.h.b16 %v974
        %v1539 = vunpack.c.l.b16 %v975
        %v1540 = vunpack.c.h.b16 %v975
        %v1541 = vunpack.c.l.b16 %v976
        %v1542 = vunpack.c.h.b16 %v976
        %v1543 = vunpack.c.l.b16 %v977
        %v1544 = vunpack.c.h.b16 %v977
        %v1545 = vunpack.c.l.b16 %v978
        %v1546 = vunpack.c.h.b16 %v978
        %v1547 = vunpack.c.l.b16 %v979
        %v1548 = vunpack.c.h.b16 %v979
        %v1549 = vunpack.c.l.b16 %v980
        %v1550 = vunpack.c.h.b16 %v980
        %v1551 = vunpack.c.l.b16 %v981
        %v1552 = vunpack.c.h.b16 %v981
        %v1553 = vunpack.c.l.b16 %v982
        %v1554 = vunpack.c.h.b16 %v982
        %v1555 = vunpack.c.l.b16 %v983
        %v1556 = vunpack.c.h.b16 %v983
        %v1557 = vunpack.c.l.b16 %v984
        %v1558 = vunpack.c.h.b16 %v984
        %v1559 = vunpack.c.l.b16 %v985
        %v1560 = vunpack.c.h.b16 %v985
        %v1561 = vunpack.c.l.b16 %v986
        %v1562 = vunpack.c.h.b16 %v986
        %v1563 = vunpack.c.l.b16 %v987
        %v1564 = vunpack.c.h.b16 %v987
        %v1565 = vunpack.c.l.b16 %v988
        %v1566 = vunpack.c.h.b16 %v988
        %v1567 = vunpack.c.l.b16 %v989
        %v1568 = vunpack.c.h.b16 %v989
        %v1569 = vunpack.c.l.b16 %v990
        %v1570 = vunpack.c.h.b16 %v990
        %v1571 = vunpack.c.l.b16 %v991
        %v1572 = vunpack.c.h.b16 %v991
        %v1573 = vunpack.c.l.b16 %v992
        %v1574 = vunpack.c.h.b16 %v992
        %v1575 = vunpack.c.l.b16 %v993
        %v1576 = vunpack.c.h.b16 %v993
        %v1577 = vunpack.c.l.b16 %v994
        %v1578 = vunpack.c.h.b16 %v994
        %v1579 = vunpack.c.l.b16 %v995
        %v1580 = vunpack.c.h.b16 %v995
        %v1581 = vunpack.c.l.b16 %v996
        %v1582 = vunpack.c.h.b16 %v996
        %v1583 = vunpack.c.l.b16 %v997
        %v1584 = vunpack.c.h.b16 %v997
        %v1585 = vunpack.c.l.b16 %v998
        %v1586 = vunpack.c.h.b16 %v998
        %v1587 = vunpack.c.l.b16 %v999
        %v1588 = vunpack.c.h.b16 %v999
        %v1589 = vunpack.c.l.b16 %v1000
        %v1590 = vunpack.c.h.b16 %v1000
        %v1591 = vunpack.c.l.b16 %v1001
        %v1592 = vunpack.c.h.b16 %v1001
        %v1593 = vunpack.c.l.b16 %v1002
        %v1594 = vunpack.c.h.b16 %v1002
        %v1595 = vunpack.c.l.b16 %v1003
        %v1596 = vunpack.c.h.b16 %v1003
        %v1597 = vunpack.c.l.b16 %v1004
        %v1598 = vunpack.c.h.b16 %v1004
        %v1599 = vunpack.c.l.b16 %v1005
        %v1600 = vunpack.c.h.b16 %v1005
        %v1601 = vunpack.c.l.b16 %v1006
        %v1602 = vunpack.c.h.b16 %v1006
        %v1603 = vunpack.c.l.b16 %v1007
        %v1604 = vunpack.c.h.b16 %v1007
        %v1605 = vunpack.c.l.b16 %v1008
        %v1606 = vunpack.c.h.b16 %v1008
        %v1607 = vunpack.c.l.b16 %v1009
        %v1608 = vunpack.c.h.b16 %v1009
        %v1609 = vunpack.c.l.b16 %v1010
        %v1610 = vunpack.c.h.b16 %v1010
        %v1611 = vunpack.c.l.b16 %v1011
        %v1612 = vunpack.c.h.b16 %v1011
        %v1613 = vunpack.c.l.b16 %v1012
        %v1614 = vunpack.c.h.b16 %v1012
        %v1615 = vunpack.c.l.b16 %v1013
        %v1616 = vunpack.c.h.b16 %v1013
        %v1617 = vunpack.c.l.b16 %v1014
        %v1618 = vunpack.c.h.b16 %v1014
        %v1619 = vunpack.c.l.b16 %v1015
        %v1620 = vunpack.c.h.b16 %v1015
        %v1621 = vunpack.c.l.b16 %v1016
        %v1622 = vunpack.c.h.b16 %v1016
        %v1623 = vunpack.c.l.b16 %v1017
        %v1624 = vunpack.c.h.b16 %v1017
        %v1625 = vunpack.c.l.b16 %v1018
        %v1626 = vunpack.c.h.b16 %v1018
        %v1627 = vunpack.c.l.b16 %v1019
        %v1628 = vunpack.c.h.b16 %v1019
        %v1629 = vunpack.c.l.b16 %v1020
        %v1630 = vunpack.c.h.b16 %v1020
        %v1631 = vunpack.c.l.b16 %v1021
        %v1632 = vunpack.c.h.b16 %v1021
        %v1633 = vunpack.c.l.b16 %v1022
        %v1634 = vunpack.c.h.b16 %v1022
        %v1635 = vunpack.c.l.b16 %v1023
        %v1636 = vunpack.c.h.b16 %v1023
        %v1637 = vunpack.c.l.b16 %v1024
        %v1638 = vunpack.c.h.b16 %v1024
        %v1639 = vunpack.c.l.b16 %v1025
        %v1640 = vunpack.c.h.b16 %v1025
        %v1641 = vunpack.c.l.b16 %v1026
        %v1642 = vunpack.c.h.b16 %v1026
        %v1643 = vunpack.c.l.b16 %v1027
        %v1644 = vunpack.c.h.b16 %v1027
        %v1645 = vunpack.c.l.b16 %v1028
        %v1646 = vunpack.c.h.b16 %v1028
        %v1647 = vunpack.c.l.b16 %v1029
        %v1648 = vunpack.c.h.b16 %v1029
        %v1649 = vunpack.c.l.b16 %v1030
        %v1650 = vunpack.c.h.b16 %v1030
        %v1651 = vunpack.c.l.b16 %v1031
        %v1652 = vunpack.c.h.b16 %v1031
        %v1653 = vunpack.c.l.b16 %v1032
        %v1654 = vunpack.c.h.b16 %v1032
        %v1655 = vunpack.c.l.b16 %v1033
        %v1656 = vunpack.c.h.b16 %v1033
        %v1657 = vunpack.c.l.b16 %v1034
        %v1658 = vunpack.c.h.b16 %v1034
        %v1659 = vunpack.c.l.b16 %v1035
        %v1660 = vunpack.c.h.b16 %v1035
        %v1661 = vunpack.c.l.b16 %v1036
        %v1662 = vunpack.c.h.b16 %v1036
        %v1663 = vunpack.c.l.b16 %v1037
        %v1664 = vunpack.c.h.b16 %v1037
        %v1665 = vunpack.c.l.b16 %v1038
        %v1666 = vunpack.c.h.b16 %v1038
        %v1667 = vunpack.c.l.b16 %v1039
        %v1668 = vunpack.c.h.b16 %v1039
        %v1669 = vunpack.c.l.b16 %v1040
        %v1670 = vunpack.c.h.b16 %v1040
        %v1671 = vunpack.c.l.b16 %v1041
        %v1672 = vunpack.c.h.b16 %v1041
        %v1673 = vunpack.c.l.b16 %v1042
        %v1674 = vunpack.c.h.b16 %v1042
        %v1675 = vunpack.c.l.b16 %v1043
        %v1676 = vunpack.c.h.b16 %v1043
        %v1677 = vunpack.c.l.b16 %v1044
        %v1678 = vunpack.c.h.b16 %v1044
        %v1679 = vunpack.c.l.b16 %v1045
        %v1680 = vunpack.c.h.b16 %v1045
        %v1681 = vunpack.c.l.b16 %v1046
        %v1682 = vunpack.c.h.b16 %v1046
        %v1683 = vunpack.c.l.b16 %v1047
        %v1684 = vunpack.c.h.b16 %v1047
        %v1685 = vunpack.c.l.b16 %v1048
        %v1686 = vunpack.c.h.b16 %v1048
        %v1687 = vunpack.c.l.b16 %v1049
        %v1688 = vunpack.c.h.b16 %v1049
        %v1689 = vunpack.c.l.b16 %v1050
        %v1690 = vunpack.c.h.b16 %v1050
        %v1691 = vunpack.c.l.b16 %v1051
        %v1692 = vunpack.c.h.b16 %v1051
        %v1693 = vunpack.c.l.b16 %v1052
        %v1694 = vunpack.c.h.b16 %v1052
        %v1695 = vunpack.c.l.b16 %v1053
        %v1696 = vunpack.c.h.b16 %v1053
        %v1697 = vunpack.c.l.b16 %v1054
        %v1698 = vunpack.c.h.b16 %v1054
        %v1699 = vunpack.c.l.b16 %v1055
        %v1700 = vunpack.c.h.b16 %v1055
        %v1701 = vunpack.c.l.b16 %v1056
        %v1702 = vunpack.c.h.b16 %v1056
        %v1703 = vunpack.c.l.b16 %v1057
        %v1704 = vunpack.c.h.b16 %v1057
        %v1705 = vunpack.c.l.b16 %v1058
        %v1706 = vunpack.c.h.b16 %v1058
        %v1707 = vunpack.c.l.b16 %v1059
        %v1708 = vunpack.c.h.b16 %v1059
        %v1709 = vunpack.c.l.b16 %v1060
        %v1710 = vunpack.c.h.b16 %v1060
        %v1711 = vunpack.c.l.b16 %v1061
        %v1712 = vunpack.c.h.b16 %v1061
        %v1713 = vunpack.c.l.b16 %v1062
        %v1714 = vunpack.c.h.b16 %v1062
        %v1715 = vunpack.c.l.b16 %v1063
        %v1716 = vunpack.c.h.b16 %v1063
        %v1717 = vunpack.c.l.b16 %v1064
        %v1718 = vunpack.c.h.b16 %v1064
        %v1719 = vunpack.c.l.b16 %v1065
        %v1720 = vunpack.c.h.b16 %v1065
        %v1721 = vunpack.c.l.b16 %v1066
        %v1722 = vunpack.c.h.b16 %v1066
        %v1723 = vunpack.c.l.b16 %v1067
        %v1724 = vunpack.c.h.b16 %v1067
        %v1725 = vunpack.c.l.b16 %v1068
        %v1726 = vunpack.c.h.b16 %v1068
        %v1727 = vunpack.c.l.b16 %v1069
        %v1728 = vunpack.c.h.b16 %v1069
        %v1729 = vunpack.c.l.b16 %v1070
        %v1730 = vunpack.c.h.b16 %v1070
        %v1731 = vunpack.c.l.b16 %v1071
        %v1732 = vunpack.c.h.b16 %v1071
        %v1733 = vunpack.c.l.b16 %v1072
        %v1734 = vunpack.c.h.b16 %v1072
        %v1735 = vunpack.c.l.b16 %v1073
        %v1736 = vunpack.c.h.b16 %v1073
        %v1737 = vunpack.c.l.b16 %v1074
        %v1738 = vunpack.c.h.b16 %v1074
        %v1739 = vunpack.c.l.b16 %v1075
        %v1740 = vunpack.c.h.b16 %v1075
        %v1741 = vunpack.c.l.b16 %v1076
        %v1742 = vunpack.c.h.b16 %v1076
        %v1743 = vunpack.c.l.b16 %v1077
        %v1744 = vunpack.c.h.b16 %v1077
        %v1745 = vunpack.c.l.b16 %v1078
        %v1746 = vunpack.c.h.b16 %v1078
        %v1747 = vunpack.c.l.b16 %v1079
        %v1748 = vunpack.c.h.b16 %v1079
        %v1749 = vunpack.c.l.b16 %v1080
        %v1750 = vunpack.c.h.b16 %v1080
        %v1751 = vunpack.c.l.b16 %v1081
        %v1752 = vunpack.c.h.b16 %v1081
        %v1753 = vunpack.c.l.b16 %v1082
        %v1754 = vunpack.c.h.b16 %v1082
        %v1755 = vunpack.c.l.b16 %v1083
        %v1756 = vunpack.c.h.b16 %v1083
        %v1757 = vunpack.c.l.b16 %v1084
        %v1758 = vunpack.c.h.b16 %v1084
        %v1759 = vunpack.c.l.b16 %v1085
        %v1760 = vunpack.c.h.b16 %v1085
        %v1761 = vunpack.c.l.b16 %v1086
        %v1762 = vunpack.c.h.b16 %v1086
        %v1763 = vunpack.c.l.b16 %v1087
        %v1764 = vunpack.c.h.b16 %v1087
        %v1765 = vunpack.c.l.b16 %v1088
        %v1766 = vunpack.c.h.b16 %v1088
        %v1767 = vunpack.c.l.b16 %v1089
        %v1768 = vunpack.c.h.b16 %v1089
        %v1769 = vunpack.c.l.b16 %v1090
        %v1770 = vunpack.c.h.b16 %v1090
        %v1771 = vunpack.c.l.b16 %v1091
        %v1772 = vunpack.c.h.b16 %v1091
        %v1773 = vunpack.c.l.b16 %v1092
        %v1774 = vunpack.c.h.b16 %v1092
        %v1775 = vunpack.c.l.b16 %v1093
        %v1776 = vunpack.c.h.b16 %v1093
        %v1777 = vunpack.c.l.b16 %v1094
        %v1778 = vunpack.c.h.b16 %v1094
        %v1779 = vunpack.c.l.b16 %v1095
        %v1780 = vunpack.c.h.b16 %v1095
        %v1781 = vunpack.c.l.b16 %v1096
        %v1782 = vunpack.c.h.b16 %v1096
        %v1783 = vunpack.c.l.b16 %v1097
        %v1784 = vunpack.c.h.b16 %v1097
        %v1785 = vunpack.c.l.b16 %v1098
        %v1786 = vunpack.c.h.b16 %v1098
        %v1787 = vunpack.c.l.b16 %v1099
        %v1788 = vunpack.c.h.b16 %v1099
        %v1789 = vunpack.c.l.b16 %v1100
        %v1790 = vunpack.c.h.b16 %v1100
        %v1791 = vunpack.c.l.b16 %v1101
        %v1792 = vunpack.c.h.b16 %v1101
        %v1793 = vunpack.c.l.b16 %v1102
        %v1794 = vunpack.c.h.b16 %v1102
        %v1795 = vunpack.c.l.b16 %v1103
        %v1796 = vunpack.c.h.b16 %v1103
        %v1797 = vunpack.c.l.b16 %v1104
        %v1798 = vunpack.c.h.b16 %v1104
        %v1799 = vunpack.c.l.b16 %v1105
        %v1800 = vunpack.c.h.b16 %v1105
        %v1801 = vunpack.c.l.b16 %v1106
        %v1802 = vunpack.c.h.b16 %v1106
        %v1803 = vunpack.c.l.b16 %v1107
        %v1804 = vunpack.c.h.b16 %v1107
        %v1805 = vunpack.c.l.b16 %v1108
        %v1806 = vunpack.c.h.b16 %v1108
        %v1807 = vunpack.c.l.b16 %v1109
        %v1808 = vunpack.c.h.b16 %v1109
        %v1809 = vunpack.c.l.b16 %v1110
        %v1810 = vunpack.c.h.b16 %v1110
        %v1811 = vunpack.c.l.b16 %v1111
        %v1812 = vunpack.c.h.b16 %v1111
        %v1813 = vunpack.c.l.b16 %v1112
        %v1814 = vunpack.c.h.b16 %v1112
        %v1815 = vunpack.c.l.b16 %v1113
        %v1816 = vunpack.c.h.b16 %v1113
        %v1817 = vunpack.c.l.b16 %v1114
        %v1818 = vunpack.c.h.b16 %v1114
        %v1819 = vunpack.c.l.b16 %v1115
        %v1820 = vunpack.c.h.b16 %v1115
        %v1821 = vunpack.c.l.b16 %v1116
        %v1822 = vunpack.c.h.b16 %v1116
        %v1823 = vunpack.c.l.b16 %v1117
        %v1824 = vunpack.c.h.b16 %v1117
        %v1825 = vunpack.c.l.b16 %v1118
        %v1826 = vunpack.c.h.b16 %v1118
        %v1827 = vunpack.c.l.b16 %v1119
        %v1828 = vunpack.c.h.b16 %v1119
        %v1829 = vunpack.c.l.b16 %v1120
        %v1830 = vunpack.c.h.b16 %v1120
        %v1831 = vunpack.c.l.b16 %v1121
        %v1832 = vunpack.c.h.b16 %v1121
        %v1833 = vunpack.c.l.b16 %v1122
        %v1834 = vunpack.c.h.b16 %v1122
        %v1835 = vunpack.c.l.b16 %v1123
        %v1836 = vunpack.c.h.b16 %v1123
        %v1837 = vunpack.c.l.b16 %v1124
        %v1838 = vunpack.c.h.b16 %v1124
        %v1839 = vunpack.c.l.b16 %v1125
        %v1840 = vunpack.c.h.b16 %v1125
        %v1841 = vunpack.c.l.b16 %v1126
        %v1842 = vunpack.c.h.b16 %v1126
        %v1843 = vunpack.c.l.b16 %v1127
        %v1844 = vunpack.c.h.b16 %v1127
        %v1845 = vunpack.c.l.b16 %v1128
        %v1846 = vunpack.c.h.b16 %v1128
        %v1847 = vunpack.c.l.b16 %v1129
        %v1848 = vunpack.c.h.b16 %v1129
        %v1849 = vunpack.c.l.b16 %v1130
        %v1850 = vunpack.c.h.b16 %v1130
        %v1851 = vunpack.c.l.b16 %v1131
        %v1852 = vunpack.c.h.b16 %v1131
        %v1853 = vunpack.c.l.b16 %v1132
        %v1854 = vunpack.c.h.b16 %v1132
        %v1855 = vunpack.c.l.b16 %v1133
        %v1856 = vunpack.c.h.b16 %v1133
        %v1857 = vunpack.c.l.b16 %v1134
        %v1858 = vunpack.c.h.b16 %v1134
        %v1859 = vunpack.c.l.b16 %v1135
        %v1860 = vunpack.c.h.b16 %v1135
        %v1861 = vunpack.c.l.b16 %v1136
        %v1862 = vunpack.c.h.b16 %v1136
        %v1863 = vunpack.c.l.b16 %v1137
        %v1864 = vunpack.c.h.b16 %v1137
        %v1865 = vunpack.c.l.b16 %v1138
        %v1866 = vunpack.c.h.b16 %v1138
        %v1867 = vunpack.c.l.b16 %v1139
        %v1868 = vunpack.c.h.b16 %v1139
        %v1869 = vunpack.c.l.b16 %v1140
        %v1870 = vunpack.c.h.b16 %v1140
        %v1871 = vunpack.c.l.b16 %v1141
        %v1872 = vunpack.c.h.b16 %v1141
        %v1873 = vunpack.c.l.b16 %v1142
        %v1874 = vunpack.c.h.b16 %v1142
        %v1875 = vunpack.c.l.b16 %v1143
        %v1876 = vunpack.c.h.b16 %v1143
        %v1877 = vunpack.c.l.b16 %v1144
        %v1878 = vunpack.c.h.b16 %v1144
        %v1879 = vunpack.c.l.b16 %v1145
        %v1880 = vunpack.c.h.b16 %v1145
        %v1881 = vunpack.c.l.b16 %v1146
        %v1882 = vunpack.c.h.b16 %v1146
        %v1883 = vunpack.c.l.b16 %v1147
        %v1884 = vunpack.c.h.b16 %v1147
        %v1885 = vunpack.c.l.b16 %v1148
        %v1886 = vunpack.c.h.b16 %v1148
        %v1887 = vunpack.c.l.b16 %v1149
        %v1888 = vunpack.c.h.b16 %v1149
        %v1889 = vunpack.c.l.b16 %v1150
        %v1890 = vunpack.c.h.b16 %v1150
        %v1891 = vunpack.c.l.b16 %v1151
        %v1892 = vunpack.c.h.b16 %v1151
        %v1893 = vunpack.c.l.b16 %v1152
        %v1894 = vunpack.c.h.b16 %v1152
        %v1895 = vunpack.c.l.b16 %v1153
        %v1896 = vunpack.c.h.b16 %v1153
        %v1897 = vunpack.c.l.b16 %v1154
        %v1898 = vunpack.c.h.b16 %v1154
        %v1899 = vunpack.c.l.b16 %v1155
        %v1900 = vunpack.c.h.b16 %v1155
        %v1901 = vunpack.c.l.b16 %v1156
        %v1902 = vunpack.c.h.b16 %v1156
        %v1903 = vunpack.c.l.b16 %v1157
        %v1904 = vunpack.c.h.b16 %v1157
        %v1905 = vunpack.c.l.b16 %v1158
        %v1906 = vunpack.c.h.b16 %v1158
        %v1907 = vunpack.c.l.b16 %v1159
        %v1908 = vunpack.c.h.b16 %v1159
        %v1909 = vunpack.c.l.b16 %v1160
        %v1910 = vunpack.c.h.b16 %v1160
        %v1911 = vunpack.c.l.b16 %v1161
        %v1912 = vunpack.c.h.b16 %v1161
        %v1913 = vunpack.c.l.b16 %v1162
        %v1914 = vunpack.c.h.b16 %v1162
        %v1915 = vunpack.c.l.b16 %v1163
        %v1916 = vunpack.c.h.b16 %v1163
        %v1917 = vunpack.c.l.b16 %v1164
        %v1918 = vunpack.c.h.b16 %v1164
        %v1919 = vunpack.c.l.b16 %v1165
        %v1920 = vunpack.c.h.b16 %v1165
        %v1921 = vunpack.c.l.b16 %v1166
        %v1922 = vunpack.c.h.b16 %v1166
        %v1923 = vunpack.c.l.b16 %v1167
        %v1924 = vunpack.c.h.b16 %v1167
        %v1925 = vunpack.c.l.b16 %v1168
        %v1926 = vunpack.c.h.b16 %v1168
        %v1927 = vunpack.c.l.b16 %v1169
        %v1928 = vunpack.c.h.b16 %v1169
        %v1929 = vunpack.c.l.b16 %v1170
        %v1930 = vunpack.c.h.b16 %v1170
        %v1931 = vunpack.c.l.b16 %v1171
        %v1932 = vunpack.c.h.b16 %v1171
        %v1933 = vunpack.c.l.b16 %v1172
        %v1934 = vunpack.c.h.b16 %v1172
        %v1935 = vunpack.c.l.b16 %v1173
        %v1936 = vunpack.c.h.b16 %v1173
        %v1937 = vunpack.c.l.b16 %v1174
        %v1938 = vunpack.c.h.b16 %v1174
        %v1939 = vunpack.c.l.b16 %v1175
        %v1940 = vunpack.c.h.b16 %v1175
        %v1941 = vunpack.c.l.b16 %v1176
        %v1942 = vunpack.c.h.b16 %v1176
        %v1943 = vunpack.c.l.b16 %v1177
        %v1944 = vunpack.c.h.b16 %v1177
        %v1945 = vunpack.c.l.b16 %v1178
        %v1946 = vunpack.c.h.b16 %v1178
        %v1947 = vunpack.c.l.b16 %v1179
        %v1948 = vunpack.c.h.b16 %v1179
        %v1949 = vunpack.c.l.b16 %v1180
        %v1950 = vunpack.c.h.b16 %v1180
        %v1951 = vunpack.c.l.b16 %v1181
        %v1952 = vunpack.c.h.b16 %v1181
        %v1953 = vunpack.c.l.b16 %v1182
        %v1954 = vunpack.c.h.b16 %v1182
        %v1955 = vunpack.c.l.b16 %v1183
        %v1956 = vunpack.c.h.b16 %v1183
        %v1957 = vunpack.c.l.b16 %v1184
        %v1958 = vunpack.c.h.b16 %v1184
        %v1959 = vunpack.c.l.b16 %v1185
        %v1960 = vunpack.c.h.b16 %v1185
        %v1961 = vunpack.c.l.b16 %v1186
        %v1962 = vunpack.c.h.b16 %v1186
        %v1963 = vunpack.c.l.b16 %v1187
        %v1964 = vunpack.c.h.b16 %v1187
        %v1965 = vunpack.c.l.b16 %v1188
        %v1966 = vunpack.c.h.b16 %v1188
        %v1967 = vunpack.c.l.b16 %v1189
        %v1968 = vunpack.c.h.b16 %v1189
        %v1969 = vunpack.c.l.b16 %v1190
        %v1970 = vunpack.c.h.b16 %v1190
        %v1971 = vunpack.c.l.b16 %v1191
        %v1972 = vunpack.c.h.b16 %v1191
        %v1973 = vunpack.c.l.b16 %v1192
        %v1974 = vunpack.c.h.b16 %v1192
        %v1975 = vunpack.c.l.b16 %v1193
        %v1976 = vunpack.c.h.b16 %v1193
        %v1977 = vunpack.c.l.b16 %v1194
        %v1978 = vunpack.c.h.b16 %v1194
        %v1979 = vunpack.c.l.b16 %v1195
        %v1980 = vunpack.c.h.b16 %v1195
        %v1981 = vunpack.c.l.b16 %v1196
        %v1982 = vunpack.c.h.b16 %v1196
        %v1983 = vunpack.c.l.b16 %v1197
        %v1984 = vunpack.c.h.b16 %v1197
        %v1985 = vunpack.c.l.b16 %v1198
        %v1986 = vunpack.c.h.b16 %v1198
        %v1987 = vunpack.c.l.b16 %v1199
        %v1988 = vunpack.c.h.b16 %v1199
        %v1989 = vunpack.c.l.b16 %v1200
        %v1990 = vunpack.c.h.b16 %v1200
        %v1991 = vunpack.c.l.b16 %v1201
        %v1992 = vunpack.c.h.b16 %v1201
        %v1993 = vunpack.c.l.b16 %v1202
        %v1994 = vunpack.c.h.b16 %v1202
        %v1995 = vunpack.c.l.b16 %v1203
        %v1996 = vunpack.c.h.b16 %v1203
        %v1997 = vunpack.c.l.b16 %v1204
        %v1998 = vunpack.c.h.b16 %v1204
        %v1999 = vunpack.c.l.b16 %v1205
        %v2000 = vunpack.c.h.b16 %v1205
        %v2001 = vunpack.c.l.b16 %v1206
        %v2002 = vunpack.c.h.b16 %v1206
        %v2003 = vunpack.c.l.b16 %v1207
        %v2004 = vunpack.c.h.b16 %v1207
        %v2005 = vunpack.c.l.b16 %v1208
        %v2006 = vunpack.c.h.b16 %v1208
        %v2007 = vunpack.c.l.b16 %v1209
        %v2008 = vunpack.c.h.b16 %v1209
        %v2009 = vunpack.c.l.b16 %v1210
        %v2010 = vunpack.c.h.b16 %v1210
        %v2011 = vunpack.c.l.b16 %v1211
        %v2012 = vunpack.c.h.b16 %v1211
        %v2013 = vunpack.c.l.b16 %v1212
        %v2014 = vunpack.c.h.b16 %v1212
        %v2015 = vunpack.c.l.b16 %v1213
        %v2016 = vunpack.c.h.b16 %v1213
        %v2017 = vunpack.c.l.b16 %v1214
        %v2018 = vunpack.c.h.b16 %v1214
        %v2019 = vunpack.c.l.b16 %v1215
        %v2020 = vunpack.c.h.b16 %v1215
        %v2021 = vunpack.c.l.b16 %v1216
        %v2022 = vunpack.c.h.b16 %v1216
        %v2023 = vpack.c.b16 %v1515, %v1511
        %v2024 = vpack.c.b16 %v1516, %v1512
        %v2025 = vpack.c.b16 %v1517, %v1513
        %v2026 = vpack.c.b16 %v1518, %v1514
        %v2027 = vpack.c.b16 %v1523, %v1519
        %v2028 = vpack.c.b16 %v1524, %v1520
        %v2029 = vpack.c.b16 %v1525, %v1521
        %v2030 = vpack.c.b16 %v1526, %v1522
        %v2031 = vpack.c.b16 %v1531, %v1527
        %v2032 = vpack.c.b16 %v1532, %v1528
        %v2033 = vpack.c.b16 %v1533, %v1529
        %v2034 = vpack.c.b16 %v1534, %v1530
        %v2035 = vpack.c.b16 %v1539, %v1535
        %v2036 = vpack.c.b16 %v1540, %v1536
        %v2037 = vpack.c.b16 %v1541, %v1537
        %v2038 = vpack.c.b16 %v1542, %v1538
        %v2039 = vpack.c.b16 %v1547, %v1543
        %v2040 = vpack.c.b16 %v1548, %v1544
        %v2041 = vpack.c.b16 %v1549, %v1545
        %v2042 = vpack.c.b16 %v1550, %v1546
        %v2043 = vpack.c.b16 %v1555, %v1551
        %v2044 = vpack.c.b16 %v1556, %v1552
        %v2045 = vpack.c.b16 %v1557, %v1553
        %v2046 = vpack.c.b16 %v1558, %v1554
        %v2047 = vpack.c.b16 %v1563, %v1559
        %v2048 = vpack.c.b16 %v1564, %v1560
        %v2049 = vpack.c.b16 %v1565, %v1561
        %v2050 = vpack.c.b16 %v1566, %v1562
        %v2051 = vpack.c.b16 %v1571, %v1567
        %v2052 = vpack.c.b16 %v1572, %v1568
        %v2053 = vpack.c.b16 %v1573, %v1569
        %v2054 = vpack.c.b16 %v1574, %v1570
        %v2055 = vpack.c.b16 %v1579, %v1575
        %v2056 = vpack.c.b16 %v1580, %v1576
        %v2057 = vpack.c.b16 %v1581, %v1577
        %v2058 = vpack.c.b16 %v1582, %v1578
        %v2059 = vpack.c.b16 %v1587, %v1583
        %v2060 = vpack.c.b16 %v1588, %v1584
        %v2061 = vpack.c.b16 %v1589, %v1585
        %v2062 = vpack.c.b16 %v1590, %v1586
        %v2063 = vpack.c.b16 %v1595, %v1591
        %v2064 = vpack.c.b16 %v1596, %v1592
        %v2065 = vpack.c.b16 %v1597, %v1593
        %v2066 = vpack.c.b16 %v1598, %v1594
        %v2067 = vpack.c.b16 %v1603, %v1599
        %v2068 = vpack.c.b16 %v1604, %v1600
        %v2069 = vpack.c.b16 %v1605, %v1601
        %v2070 = vpack.c.b16 %v1606, %v1602
        %v2071 = vpack.c.b16 %v1611, %v1607
        %v2072 = vpack.c.b16 %v1612, %v1608
        %v2073 = vpack.c.b16 %v1613, %v1609
        %v2074 = vpack.c.b16 %v1614, %v1610
        %v2075 = vpack.c.b16 %v1619, %v1615
        %v2076 = vpack.c.b16 %v1620, %v1616
        %v2077 = vpack.c.b16 %v1621, %v1617
        %v2078 = vpack.c.b16 %v1622, %v1618
        %v2079 = vpack.c.b16 %v1627, %v1623
        %v2080 = vpack.c.b16 %v1628, %v1624
        %v2081 = vpack.c.b16 %v1629, %v1625
        %v2082 = vpack.c.b16 %v1630, %v1626
        %v2083 = vpack.c.b16 %v1635, %v1631
        %v2084 = vpack.c.b16 %v1636, %v1632
        %v2085 = vpack.c.b16 %v1637, %v1633
        %v2086 = vpack.c.b16 %v1638, %v1634
        %v2087 = vpack.c.b16 %v1643, %v1639
        %v2088 = vpack.c.b16 %v1644, %v1640
        %v2089 = vpack.c.b16 %v1645, %v1641
        %v2090 = vpack.c.b16 %v1646, %v1642
        %v2091 = vpack.c.b16 %v1651, %v1647
        %v2092 = vpack.c.b16 %v1652, %v1648
        %v2093 = vpack.c.b16 %v1653, %v1649
        %v2094 = vpack.c.b16 %v1654, %v1650
        %v2095 = vpack.c.b16 %v1659, %v1655
        %v2096 = vpack.c.b16 %v1660, %v1656
        %v2097 = vpack.c.b16 %v1661, %v1657
        %v2098 = vpack.c.b16 %v1662, %v1658
        %v2099 = vpack.c.b16 %v1667, %v1663
        %v2100 = vpack.c.b16 %v1668, %v1664
        %v2101 = vpack.c.b16 %v1669, %v1665
        %v2102 = vpack.c.b16 %v1670, %v1666
        %v2103 = vpack.c.b16 %v1675, %v1671
        %v2104 = vpack.c.b16 %v1676, %v1672
        %v2105 = vpack.c.b16 %v1677, %v1673
        %v2106 = vpack.c.b16 %v1678, %v1674
        %v2107 = vpack.c.b16 %v1683, %v1679
        %v2108 = vpack.c.b16 %v1684, %v1680
        %v2109 = vpack.c.b16 %v1685, %v1681
        %v2110 = vpack.c.b16 %v1686, %v1682
        %v2111 = vpack.c.b16 %v1691, %v1687
        %v2112 = vpack.c.b16 %v1692, %v1688
        %v2113 = vpack.c.b16 %v1693, %v1689
        %v2114 = vpack.c.b16 %v1694, %v1690
        %v2115 = vpack.c.b16 %v1699, %v1695
        %v2116 = vpack.c.b16 %v1700, %v1696
        %v2117 = vpack.c.b16 %v1701, %v1697
        %v2118 = vpack.c.b16 %v1702, %v1698
        %v2119 = vpack.c.b16 %v1707, %v1703
        %v2120 = vpack.c.b16 %v1708, %v1704
        %v2121 = vpack.c.b16 %v1709, %v1705
        %v2122 = vpack.c.b16 %v1710, %v1706
        %v2123 = vpack.c.b16 %v1715, %v1711
        %v2124 = vpack.c.b16 %v1716, %v1712
        %v2125 = vpack.c.b16 %v1717, %v1713
        %v2126 = vpack.c.b16 %v1718, %v1714
        %v2127 = vpack.c.b16 %v1723, %v1719
        %v2128 = vpack.c.b16 %v1724, %v1720
        %v2129 = vpack.c.b16 %v1725, %v1721
        %v2130 = vpack.c.b16 %v1726, %v1722
        %v2131 = vpack.c.b16 %v1731, %v1727
        %v2132 = vpack.c.b16 %v1732, %v1728
        %v2133 = vpack.c.b16 %v1733, %v1729
        %v2134 = vpack.c.b16 %v1734, %v1730
        %v2135 = vpack.c.b16 %v1739, %v1735
        %v2136 = vpack.c.b16 %v1740, %v1736
        %v2137 = vpack.c.b16 %v1741, %v1737
        %v2138 = vpack.c.b16 %v1742, %v1738
        %v2139 = vpack.c.b16 %v1747, %v1743
        %v2140 = vpack.c.b16 %v1748, %v1744
        %v2141 = vpack.c.b16 %v1749, %v1745
        %v2142 = vpack.c.b16 %v1750, %v1746
        %v2143 = vpack.c.b16 %v1755, %v1751
        %v2144 = vpack.c.b16 %v1756, %v1752
        %v2145 = vpack.c.b16 %v1757, %v1753
        %v2146 = vpack.c.b16 %v1758, %v1754
        %v2147 = vpack.c.b16 %v1763, %v1759
        %v2148 = vpack.c.b16 %v1764, %v1760
        %v2149 = vpack.c.b16 %v1765, %v1761
        %v2150 = vpack.c.b16 %v1766, %v1762
        %v2151 = vpack.c.b16 %v1771, %v1767
        %v2152 = vpack.c.b16 %v1772, %v1768
        %v2153 = vpack.c.b16 %v1773, %v1769
        %v2154 = vpack.c.b16 %v1774, %v1770
        %v2155 = vpack.c.b16 %v1779, %v1775
        %v2156 = vpack.c.b16 %v1780, %v1776
        %v2157 = vpack.c.b16 %v1781, %v1777
        %v2158 = vpack.c.b16 %v1782, %v1778
        %v2159 = vpack.c.b16 %v1787, %v1783
        %v2160 = vpack.c.b16 %v1788, %v1784
        %v2161 = vpack.c.b16 %v1789, %v1785
        %v2162 = vpack.c.b16 %v1790, %v1786
        %v2163 = vpack.c.b16 %v1795, %v1791
        %v2164 = vpack.c.b16 %v1796, %v1792
        %v2165 = vpack.c.b16 %v1797, %v1793
        %v2166 = vpack.c.b16 %v1798, %v1794
        %v2167 = vpack.c.b16 %v1803, %v1799
        %v2168 = vpack.c.b16 %v1804, %v1800
        %v2169 = vpack.c.b16 %v1805, %v1801
        %v2170 = vpack.c.b16 %v1806, %v1802
        %v2171 = vpack.c.b16 %v1811, %v1807
        %v2172 = vpack.c.b16 %v1812, %v1808
        %v2173 = vpack.c.b16 %v1813, %v1809
        %v2174 = vpack.c.b16 %v1814, %v1810
        %v2175 = vpack.c.b16 %v1819, %v1815
        %v2176 = vpack.c.b16 %v1820, %v1816
        %v2177 = vpack.c.b16 %v1821, %v1817
        %v2178 = vpack.c.b16 %v1822, %v1818
        %v2179 = vpack.c.b16 %v1827, %v1823
        %v2180 = vpack.c.b16 %v1828, %v1824
        %v2181 = vpack.c.b16 %v1829, %v1825
        %v2182 = vpack.c.b16 %v1830, %v1826
        %v2183 = vpack.c.b16 %v1835, %v1831
        %v2184 = vpack.c.b16 %v1836, %v1832
        %v2185 = vpack.c.b16 %v1837, %v1833
        %v2186 = vpack.c.b16 %v1838, %v1834
        %v2187 = vpack.c.b16 %v1843, %v1839
        %v2188 = vpack.c.b16 %v1844, %v1840
        %v2189 = vpack.c.b16 %v1845, %v1841
        %v2190 = vpack.c.b16 %v1846, %v1842
        %v2191 = vpack.c.b16 %v1851, %v1847
        %v2192 = vpack.c.b16 %v1852, %v1848
        %v2193 = vpack.c.b16 %v1853, %v1849
        %v2194 = vpack.c.b16 %v1854, %v1850
        %v2195 = vpack.c.b16 %v1859, %v1855
        %v2196 = vpack.c.b16 %v1860, %v1856
        %v2197 = vpack.c.b16 %v1861, %v1857
        %v2198 = vpack.c.b16 %v1862, %v1858
        %v2199 = vpack.c.b16 %v1867, %v1863
        %v2200 = vpack.c.b16 %v1868, %v1864
        %v2201 = vpack.c.b16 %v1869, %v1865
        %v2202 = vpack.c.b16 %v1870, %v1866
        %v2203 = vpack.c.b16 %v1875, %v1871
        %v2204 = vpack.c.b16 %v1876, %v1872
        %v2205 = vpack.c.b16 %v1877, %v1873
        %v2206 = vpack.c.b16 %v1878, %v1874
        %v2207 = vpack.c.b16 %v1883, %v1879
        %v2208 = vpack.c.b16 %v1884, %v1880
        %v2209 = vpack.c.b16 %v1885, %v1881
        %v2210 = vpack.c.b16 %v1886, %v1882
        %v2211 = vpack.c.b16 %v1891, %v1887
        %v2212 = vpack.c.b16 %v1892, %v1888
        %v2213 = vpack.c.b16 %v1893, %v1889
        %v2214 = vpack.c.b16 %v1894, %v1890
        %v2215 = vpack.c.b16 %v1899, %v1895
        %v2216 = vpack.c.b16 %v1900, %v1896
        %v2217 = vpack.c.b16 %v1901, %v1897
        %v2218 = vpack.c.b16 %v1902, %v1898
        %v2219 = vpack.c.b16 %v1907, %v1903
        %v2220 = vpack.c.b16 %v1908, %v1904
        %v2221 = vpack.c.b16 %v1909, %v1905
        %v2222 = vpack.c.b16 %v1910, %v1906
        %v2223 = vpack.c.b16 %v1915, %v1911
        %v2224 = vpack.c.b16 %v1916, %v1912
        %v2225 = vpack.c.b16 %v1917, %v1913
        %v2226 = vpack.c.b16 %v1918, %v1914
        %v2227 = vpack.c.b16 %v1923, %v1919
        %v2228 = vpack.c.b16 %v1924, %v1920
        %v2229 = vpack.c.b16 %v1925, %v1921
        %v2230 = vpack.c.b16 %v1926, %v1922
        %v2231 = vpack.c.b16 %v1931, %v1927
        %v2232 = vpack.c.b16 %v1932, %v1928
        %v2233 = vpack.c.b16 %v1933, %v1929
        %v2234 = vpack.c.b16 %v1934, %v1930
        %v2235 = vpack.c.b16 %v1939, %v1935
        %v2236 = vpack.c.b16 %v1940, %v1936
        %v2237 = vpack.c.b16 %v1941, %v1937
        %v2238 = vpack.c.b16 %v1942, %v1938
        %v2239 = vpack.c.b16 %v1947, %v1943
        %v2240 = vpack.c.b16 %v1948, %v1944
        %v2241 = vpack.c.b16 %v1949, %v1945
        %v2242 = vpack.c.b16 %v1950, %v1946
        %v2243 = vpack.c.b16 %v1955, %v1951
        %v2244 = vpack.c.b16 %v1956, %v1952
        %v2245 = vpack.c.b16 %v1957, %v1953
        %v2246 = vpack.c.b16 %v1958, %v1954
        %v2247 = vpack.c.b16 %v1963, %v1959
        %v2248 = vpack.c.b16 %v1964, %v1960
        %v2249 = vpack.c.b16 %v1965, %v1961
        %v2250 = vpack.c.b16 %v1966, %v1962
        %v2251 = vpack.c.b16 %v1971, %v1967
        %v2252 = vpack.c.b16 %v1972, %v1968
        %v2253 = vpack.c.b16 %v1973, %v1969
        %v2254 = vpack.c.b16 %v1974, %v1970
        %v2255 = vpack.c.b16 %v1979, %v1975
        %v2256 = vpack.c.b16 %v1980, %v1976
        %v2257 = vpack.c.b16 %v1981, %v1977
        %v2258 = vpack.c.b16 %v1982, %v1978
        %v2259 = vpack.c.b16 %v1987, %v1983
        %v2260 = vpack.c.b16 %v1988, %v1984
        %v2261 = vpack.c.b16 %v1989, %v1985
        %v2262 = vpack.c.b16 %v1990, %v1986
        %v2263 = vpack.c.b16 %v1995, %v1991
        %v2264 = vpack.c.b16 %v1996, %v1992
        %v2265 = vpack.c.b16 %v1997, %v1993
        %v2266 = vpack.c.b16 %v1998, %v1994
        %v2267 = vpack.c.b16 %v2003, %v1999
        %v2268 = vpack.c.b16 %v2004, %v2000
        %v2269 = vpack.c.b16 %v2005, %v2001
        %v2270 = vpack.c.b16 %v2006, %v2002
        %v2271 = vpack.c.b16 %v2011, %v2007
        %v2272 = vpack.c.b16 %v2012, %v2008
        %v2273 = vpack.c.b16 %v2013, %v2009
        %v2274 = vpack.c.b16 %v2014, %v2010
        %v2275 = vpack.c.b16 %v2019, %v2015
        %v2276 = vpack.c.b16 %v2020, %v2016
        %v2277 = vpack.c.b16 %v2021, %v2017
        %v2278 = vpack.c.b16 %v2022, %v2018
        %2535 = vmatpush.bf16.msra.mxu0 %v2051
        %2536 = vmatpush.bf16.msra.mxu0 %v2047
        %2537 = vmatpush.bf16.msra.mxu0 %v2043
        %2538 = vmatpush.bf16.msra.mxu0 %v2039
        %2539 = vmatpush.bf16.msra.mxu0 %v2035
        %2540 = vmatpush.bf16.msra.mxu0 %v2031
        %2541 = vmatpush.bf16.msra.mxu0 %v2027
        %2542 = vmatpush.bf16.msra.mxu0 %v2023
        %2543 = vmatmul.bf16.gmra.mxu0 %v1239
        %v2544 = vpop.f32.mrf.mxu0
        %v2545 = vadd.f32 %v1219, %v2544
        %v2546 = vpop.f32.mrf.mxu0
        %2547 = vdwg.mxu0
        %2548 = vmatpush.bf16.msra.mxu0 %v2083
        %2549 = vmatpush.bf16.msra.mxu0 %v2079
        %2550 = vmatpush.bf16.msra.mxu0 %v2075
        %2551 = vmatpush.bf16.msra.mxu0 %v2071
        %2552 = vmatpush.bf16.msra.mxu0 %v2067
        %2553 = vmatpush.bf16.msra.mxu0 %v2063
        %2554 = vmatpush.bf16.msra.mxu0 %v2059
        %2555 = vmatpush.bf16.msra.mxu0 %v2055
        %2556 = vmatmul.bf16.gmra.mxu0 %v1240
        %v2557 = vpop.f32.mrf.mxu0
        %v2558 = vadd.f32 %v2545, %v2557
        %v2559 = vpop.f32.mrf.mxu0
        %2560 = vdwg.mxu0
        %2561 = vmatpush.bf16.msra.mxu0 %v2115
        %2562 = vmatpush.bf16.msra.mxu0 %v2111
        %2563 = vmatpush.bf16.msra.mxu0 %v2107
        %2564 = vmatpush.bf16.msra.mxu0 %v2103
        %2565 = vmatpush.bf16.msra.mxu0 %v2099
        %2566 = vmatpush.bf16.msra.mxu0 %v2095
        %2567 = vmatpush.bf16.msra.mxu0 %v2091
        %2568 = vmatpush.bf16.msra.mxu0 %v2087
        %2569 = vmatmul.bf16.gmra.mxu0 %v1241
        %v2570 = vpop.f32.mrf.mxu0
        %v2571 = vadd.f32 %v2558, %v2570
        %v2572 = vpop.f32.mrf.mxu0
        %2573 = vdwg.mxu0
        %2574 = vmatpush.bf16.msra.mxu0 %v2147
        %2575 = vmatpush.bf16.msra.mxu0 %v2143
        %2576 = vmatpush.bf16.msra.mxu0 %v2139
        %2577 = vmatpush.bf16.msra.mxu0 %v2135
        %2578 = vmatpush.bf16.msra.mxu0 %v2131
        %2579 = vmatpush.bf16.msra.mxu0 %v2127
        %2580 = vmatpush.bf16.msra.mxu0 %v2123
        %2581 = vmatpush.bf16.msra.mxu0 %v2119
        %2582 = vmatmul.bf16.gmra.mxu0 %v1242
        %v2583 = vpop.f32.mrf.mxu0
        %v2584 = vadd.f32 %v2571, %v2583
        %v2585 = vpop.f32.mrf.mxu0
        %2586 = vdwg.mxu0
        %2587 = vmatpush.bf16.msra.mxu0 %v2179
        %2588 = vmatpush.bf16.msra.mxu0 %v2175
        %2589 = vmatpush.bf16.msra.mxu0 %v2171
        %2590 = vmatpush.bf16.msra.mxu0 %v2167
        %2591 = vmatpush.bf16.msra.mxu0 %v2163
        %2592 = vmatpush.bf16.msra.mxu0 %v2159
        %2593 = vmatpush.bf16.msra.mxu0 %v2155
        %2594 = vmatpush.bf16.msra.mxu0 %v2151
        %2595 = vmatmul.bf16.gmra.mxu0 %v1243
        %v2596 = vpop.f32.mrf.mxu0
        %v2597 = vadd.f32 %v2584, %v2596
        %v2598 = vpop.f32.mrf.mxu0
        %2599 = vdwg.mxu0
        %2600 = vmatpush.bf16.msra.mxu0 %v2211
        %2601 = vmatpush.bf16.msra.mxu0 %v2207
        %2602 = vmatpush.bf16.msra.mxu0 %v2203
        %2603 = vmatpush.bf16.msra.mxu0 %v2199
        %2604 = vmatpush.bf16.msra.mxu0 %v2195
        %2605 = vmatpush.bf16.msra.mxu0 %v2191
        %2606 = vmatpush.bf16.msra.mxu0 %v2187
        %2607 = vmatpush.bf16.msra.mxu0 %v2183
        %2608 = vmatmul.bf16.gmra.mxu0 %v1244
        %v2609 = vpop.f32.mrf.mxu0
        %v2610 = vadd.f32 %v2597, %v2609
        %v2611 = vpop.f32.mrf.mxu0
        %2612 = vdwg.mxu0
        %2613 = vmatpush.bf16.msra.mxu0 %v2243
        %2614 = vmatpush.bf16.msra.mxu0 %v2239
        %2615 = vmatpush.bf16.msra.mxu0 %v2235
        %2616 = vmatpush.bf16.msra.mxu0 %v2231
        %2617 = vmatpush.bf16.msra.mxu0 %v2227
        %2618 = vmatpush.bf16.msra.mxu0 %v2223
        %2619 = vmatpush.bf16.msra.mxu0 %v2219
        %2620 = vmatpush.bf16.msra.mxu0 %v2215
        %2621 = vmatmul.bf16.gmra.mxu0 %v1245
        %v2622 = vpop.f32.mrf.mxu0
        %v2623 = vadd.f32 %v2610, %v2622
        %v2624 = vpop.f32.mrf.mxu0
        %2625 = vdwg.mxu0
        %2626 = vmatpush.bf16.msra.mxu0 %v2275
        %2627 = vmatpush.bf16.msra.mxu0 %v2271
        %2628 = vmatpush.bf16.msra.mxu0 %v2267
        %2629 = vmatpush.bf16.msra.mxu0 %v2263
        %2630 = vmatpush.bf16.msra.mxu0 %v2259
        %2631 = vmatpush.bf16.msra.mxu0 %v2255
        %2632 = vmatpush.bf16.msra.mxu0 %v2251
        %2633 = vmatpush.bf16.msra.mxu0 %v2247
        %2634 = vmatmul.bf16.gmra.mxu0 %v1246
        %v2635 = vpop.f32.mrf.mxu0
        %v2636 = vadd.f32 %v2623, %v2635
        %v2637 = vpop.f32.mrf.mxu0
        %2638 = vdwg.mxu0
        %2639 = vmatpush.bf16.msra.mxu0 %v2052
        %2640 = vmatpush.bf16.msra.mxu0 %v2048
        %2641 = vmatpush.bf16.msra.mxu0 %v2044
        %2642 = vmatpush.bf16.msra.mxu0 %v2040
        %2643 = vmatpush.bf16.msra.mxu0 %v2036
        %2644 = vmatpush.bf16.msra.mxu0 %v2032
        %2645 = vmatpush.bf16.msra.mxu0 %v2028
        %2646 = vmatpush.bf16.msra.mxu0 %v2024
        %2647 = vmatmul.bf16.gmra.mxu0 %v1239
        %v2648 = vpop.f32.mrf.mxu0
        %v2649 = vadd.f32 %v1220, %v2648
        %v2650 = vpop.f32.mrf.mxu0
        %2651 = vdwg.mxu0
        %2652 = vmatpush.bf16.msra.mxu0 %v2084
        %2653 = vmatpush.bf16.msra.mxu0 %v2080
        %2654 = vmatpush.bf16.msra.mxu0 %v2076
        %2655 = vmatpush.bf16.msra.mxu0 %v2072
        %2656 = vmatpush.bf16.msra.mxu0 %v2068
        %2657 = vmatpush.bf16.msra.mxu0 %v2064
        %2658 = vmatpush.bf16.msra.mxu0 %v2060
        %2659 = vmatpush.bf16.msra.mxu0 %v2056
        %2660 = vmatmul.bf16.gmra.mxu0 %v1240
        %v2661 = vpop.f32.mrf.mxu0
        %v2662 = vadd.f32 %v2649, %v2661
        %v2663 = vpop.f32.mrf.mxu0
        %2664 = vdwg.mxu0
        %2665 = vmatpush.bf16.msra.mxu0 %v2116
        %2666 = vmatpush.bf16.msra.mxu0 %v2112
        %2667 = vmatpush.bf16.msra.mxu0 %v2108
        %2668 = vmatpush.bf16.msra.mxu0 %v2104
        %2669 = vmatpush.bf16.msra.mxu0 %v2100
        %2670 = vmatpush.bf16.msra.mxu0 %v2096
        %2671 = vmatpush.bf16.msra.mxu0 %v2092
        %2672 = vmatpush.bf16.msra.mxu0 %v2088
        %2673 = vmatmul.bf16.gmra.mxu0 %v1241
        %v2674 = vpop.f32.mrf.mxu0
        %v2675 = vadd.f32 %v2662, %v2674
        %v2676 = vpop.f32.mrf.mxu0
        %2677 = vdwg.mxu0
        %2678 = vmatpush.bf16.msra.mxu0 %v2148
        %2679 = vmatpush.bf16.msra.mxu0 %v2144
        %2680 = vmatpush.bf16.msra.mxu0 %v2140
        %2681 = vmatpush.bf16.msra.mxu0 %v2136
        %2682 = vmatpush.bf16.msra.mxu0 %v2132
        %2683 = vmatpush.bf16.msra.mxu0 %v2128
        %2684 = vmatpush.bf16.msra.mxu0 %v2124
        %2685 = vmatpush.bf16.msra.mxu0 %v2120
        %2686 = vmatmul.bf16.gmra.mxu0 %v1242
        %v2687 = vpop.f32.mrf.mxu0
        %v2688 = vadd.f32 %v2675, %v2687
        %v2689 = vpop.f32.mrf.mxu0
        %2690 = vdwg.mxu0
        %2691 = vmatpush.bf16.msra.mxu0 %v2180
        %2692 = vmatpush.bf16.msra.mxu0 %v2176
        %2693 = vmatpush.bf16.msra.mxu0 %v2172
        %2694 = vmatpush.bf16.msra.mxu0 %v2168
        %2695 = vmatpush.bf16.msra.mxu0 %v2164
        %2696 = vmatpush.bf16.msra.mxu0 %v2160
        %2697 = vmatpush.bf16.msra.mxu0 %v2156
        %2698 = vmatpush.bf16.msra.mxu0 %v2152
        %2699 = vmatmul.bf16.gmra.mxu0 %v1243
        %v2700 = vpop.f32.mrf.mxu0
        %v2701 = vadd.f32 %v2688, %v2700
        %v2702 = vpop.f32.mrf.mxu0
        %2703 = vdwg.mxu0
        %2704 = vmatpush.bf16.msra.mxu0 %v2212
        %2705 = vmatpush.bf16.msra.mxu0 %v2208
        %2706 = vmatpush.bf16.msra.mxu0 %v2204
        %2707 = vmatpush.bf16.msra.mxu0 %v2200
        %2708 = vmatpush.bf16.msra.mxu0 %v2196
        %2709 = vmatpush.bf16.msra.mxu0 %v2192
        %2710 = vmatpush.bf16.msra.mxu0 %v2188
        %2711 = vmatpush.bf16.msra.mxu0 %v2184
        %2712 = vmatmul.bf16.gmra.mxu0 %v1244
        %v2713 = vpop.f32.mrf.mxu0
        %v2714 = vadd.f32 %v2701, %v2713
        %v2715 = vpop.f32.mrf.mxu0
        %2716 = vdwg.mxu0
        %2717 = vmatpush.bf16.msra.mxu0 %v2244
        %2718 = vmatpush.bf16.msra.mxu0 %v2240
        %2719 = vmatpush.bf16.msra.mxu0 %v2236
        %2720 = vmatpush.bf16.msra.mxu0 %v2232
        %2721 = vmatpush.bf16.msra.mxu0 %v2228
        %2722 = vmatpush.bf16.msra.mxu0 %v2224
        %2723 = vmatpush.bf16.msra.mxu0 %v2220
        %2724 = vmatpush.bf16.msra.mxu0 %v2216
        %2725 = vmatmul.bf16.gmra.mxu0 %v1245
        %v2726 = vpop.f32.mrf.mxu0
        %v2727 = vadd.f32 %v2714, %v2726
        %v2728 = vpop.f32.mrf.mxu0
        %2729 = vdwg.mxu0
        %2730 = vmatpush.bf16.msra.mxu0 %v2276
        %2731 = vmatpush.bf16.msra.mxu0 %v2272
        %2732 = vmatpush.bf16.msra.mxu0 %v2268
        %2733 = vmatpush.bf16.msra.mxu0 %v2264
        %2734 = vmatpush.bf16.msra.mxu0 %v2260
        %2735 = vmatpush.bf16.msra.mxu0 %v2256
        %2736 = vmatpush.bf16.msra.mxu0 %v2252
        %2737 = vmatpush.bf16.msra.mxu0 %v2248
        %2738 = vmatmul.bf16.gmra.mxu0 %v1246
        %v2739 = vpop.f32.mrf.mxu0
        %v2740 = vadd.f32 %v2727, %v2739
        %v2741 = vpop.f32.mrf.mxu0
        %2742 = vdwg.mxu0
        %2743 = vmatpush.bf16.msra.mxu0 %v2053
        %2744 = vmatpush.bf16.msra.mxu0 %v2049
        %2745 = vmatpush.bf16.msra.mxu0 %v2045
        %2746 = vmatpush.bf16.msra.mxu0 %v2041
        %2747 = vmatpush.bf16.msra.mxu0 %v2037
        %2748 = vmatpush.bf16.msra.mxu0 %v2033
        %2749 = vmatpush.bf16.msra.mxu0 %v2029
        %2750 = vmatpush.bf16.msra.mxu0 %v2025
        %2751 = vmatmul.bf16.gmra.mxu0 %v1239
        %v2752 = vpop.f32.mrf.mxu0
        %v2753 = vadd.f32 %v1221, %v2752
        %v2754 = vpop.f32.mrf.mxu0
        %2755 = vdwg.mxu0
        %2756 = vmatpush.bf16.msra.mxu0 %v2085
        %2757 = vmatpush.bf16.msra.mxu0 %v2081
        %2758 = vmatpush.bf16.msra.mxu0 %v2077
        %2759 = vmatpush.bf16.msra.mxu0 %v2073
        %2760 = vmatpush.bf16.msra.mxu0 %v2069
        %2761 = vmatpush.bf16.msra.mxu0 %v2065
        %2762 = vmatpush.bf16.msra.mxu0 %v2061
        %2763 = vmatpush.bf16.msra.mxu0 %v2057
        %2764 = vmatmul.bf16.gmra.mxu0 %v1240
        %v2765 = vpop.f32.mrf.mxu0
        %v2766 = vadd.f32 %v2753, %v2765
        %v2767 = vpop.f32.mrf.mxu0
        %2768 = vdwg.mxu0
        %2769 = vmatpush.bf16.msra.mxu0 %v2117
        %2770 = vmatpush.bf16.msra.mxu0 %v2113
        %2771 = vmatpush.bf16.msra.mxu0 %v2109
        %2772 = vmatpush.bf16.msra.mxu0 %v2105
        %2773 = vmatpush.bf16.msra.mxu0 %v2101
        %2774 = vmatpush.bf16.msra.mxu0 %v2097
        %2775 = vmatpush.bf16.msra.mxu0 %v2093
        %2776 = vmatpush.bf16.msra.mxu0 %v2089
        %2777 = vmatmul.bf16.gmra.mxu0 %v1241
        %v2778 = vpop.f32.mrf.mxu0
        %v2779 = vadd.f32 %v2766, %v2778
        %v2780 = vpop.f32.mrf.mxu0
        %2781 = vdwg.mxu0
        %2782 = vmatpush.bf16.msra.mxu0 %v2149
        %2783 = vmatpush.bf16.msra.mxu0 %v2145
        %2784 = vmatpush.bf16.msra.mxu0 %v2141
        %2785 = vmatpush.bf16.msra.mxu0 %v2137
        %2786 = vmatpush.bf16.msra.mxu0 %v2133
        %2787 = vmatpush.bf16.msra.mxu0 %v2129
        %2788 = vmatpush.bf16.msra.mxu0 %v2125
        %2789 = vmatpush.bf16.msra.mxu0 %v2121
        %2790 = vmatmul.bf16.gmra.mxu0 %v1242
        %v2791 = vpop.f32.mrf.mxu0
        %v2792 = vadd.f32 %v2779, %v2791
        %v2793 = vpop.f32.mrf.mxu0
        %2794 = vdwg.mxu0
        %2795 = vmatpush.bf16.msra.mxu0 %v2181
        %2796 = vmatpush.bf16.msra.mxu0 %v2177
        %2797 = vmatpush.bf16.msra.mxu0 %v2173
        %2798 = vmatpush.bf16.msra.mxu0 %v2169
        %2799 = vmatpush.bf16.msra.mxu0 %v2165
        %2800 = vmatpush.bf16.msra.mxu0 %v2161
        %2801 = vmatpush.bf16.msra.mxu0 %v2157
        %2802 = vmatpush.bf16.msra.mxu0 %v2153
        %2803 = vmatmul.bf16.gmra.mxu0 %v1243
        %v2804 = vpop.f32.mrf.mxu0
        %v2805 = vadd.f32 %v2792, %v2804
        %v2806 = vpop.f32.mrf.mxu0
        %2807 = vdwg.mxu0
        %2808 = vmatpush.bf16.msra.mxu0 %v2213
        %2809 = vmatpush.bf16.msra.mxu0 %v2209
        %2810 = vmatpush.bf16.msra.mxu0 %v2205
        %2811 = vmatpush.bf16.msra.mxu0 %v2201
        %2812 = vmatpush.bf16.msra.mxu0 %v2197
        %2813 = vmatpush.bf16.msra.mxu0 %v2193
        %2814 = vmatpush.bf16.msra.mxu0 %v2189
        %2815 = vmatpush.bf16.msra.mxu0 %v2185
        %2816 = vmatmul.bf16.gmra.mxu0 %v1244
        %v2817 = vpop.f32.mrf.mxu0
        %v2818 = vadd.f32 %v2805, %v2817
        %v2819 = vpop.f32.mrf.mxu0
        %2820 = vdwg.mxu0
        %2821 = vmatpush.bf16.msra.mxu0 %v2245
        %2822 = vmatpush.bf16.msra.mxu0 %v2241
        %2823 = vmatpush.bf16.msra.mxu0 %v2237
        %2824 = vmatpush.bf16.msra.mxu0 %v2233
        %2825 = vmatpush.bf16.msra.mxu0 %v2229
        %2826 = vmatpush.bf16.msra.mxu0 %v2225
        %2827 = vmatpush.bf16.msra.mxu0 %v2221
        %2828 = vmatpush.bf16.msra.mxu0 %v2217
        %2829 = vmatmul.bf16.gmra.mxu0 %v1245
        %v2830 = vpop.f32.mrf.mxu0
        %v2831 = vadd.f32 %v2818, %v2830
        %v2832 = vpop.f32.mrf.mxu0
        %2833 = vdwg.mxu0
        %2834 = vmatpush.bf16.msra.mxu0 %v2277
        %2835 = vmatpush.bf16.msra.mxu0 %v2273
        %2836 = vmatpush.bf16.msra.mxu0 %v2269
        %2837 = vmatpush.bf16.msra.mxu0 %v2265
        %2838 = vmatpush.bf16.msra.mxu0 %v2261
        %2839 = vmatpush.bf16.msra.mxu0 %v2257
        %2840 = vmatpush.bf16.msra.mxu0 %v2253
        %2841 = vmatpush.bf16.msra.mxu0 %v2249
        %2842 = vmatmul.bf16.gmra.mxu0 %v1246
        %v2843 = vpop.f32.mrf.mxu0
        %v2844 = vadd.f32 %v2831, %v2843
        %v2845 = vpop.f32.mrf.mxu0
        %2846 = vdwg.mxu0
        %2847 = vmatpush.bf16.msra.mxu0 %v2054
        %2848 = vmatpush.bf16.msra.mxu0 %v2050
        %2849 = vmatpush.bf16.msra.mxu0 %v2046
        %2850 = vmatpush.bf16.msra.mxu0 %v2042
        %2851 = vmatpush.bf16.msra.mxu0 %v2038
        %2852 = vmatpush.bf16.msra.mxu0 %v2034
        %2853 = vmatpush.bf16.msra.mxu0 %v2030
        %2854 = vmatpush.bf16.msra.mxu0 %v2026
        %2855 = vmatmul.bf16.gmra.mxu0 %v1239
        %v2856 = vpop.f32.mrf.mxu0
        %v2857 = vadd.f32 %v1222, %v2856
        %v2858 = vpop.f32.mrf.mxu0
        %2859 = vdwg.mxu0
        %2860 = vmatpush.bf16.msra.mxu0 %v2086
        %2861 = vmatpush.bf16.msra.mxu0 %v2082
        %2862 = vmatpush.bf16.msra.mxu0 %v2078
        %2863 = vmatpush.bf16.msra.mxu0 %v2074
        %2864 = vmatpush.bf16.msra.mxu0 %v2070
        %2865 = vmatpush.bf16.msra.mxu0 %v2066
        %2866 = vmatpush.bf16.msra.mxu0 %v2062
        %2867 = vmatpush.bf16.msra.mxu0 %v2058
        %2868 = vmatmul.bf16.gmra.mxu0 %v1240
        %v2869 = vpop.f32.mrf.mxu0
        %v2870 = vadd.f32 %v2857, %v2869
        %v2871 = vpop.f32.mrf.mxu0
        %2872 = vdwg.mxu0
        %2873 = vmatpush.bf16.msra.mxu0 %v2118
        %2874 = vmatpush.bf16.msra.mxu0 %v2114
        %2875 = vmatpush.bf16.msra.mxu0 %v2110
        %2876 = vmatpush.bf16.msra.mxu0 %v2106
        %2877 = vmatpush.bf16.msra.mxu0 %v2102
        %2878 = vmatpush.bf16.msra.mxu0 %v2098
        %2879 = vmatpush.bf16.msra.mxu0 %v2094
        %2880 = vmatpush.bf16.msra.mxu0 %v2090
        %2881 = vmatmul.bf16.gmra.mxu0 %v1241
        %v2882 = vpop.f32.mrf.mxu0
        %v2883 = vadd.f32 %v2870, %v2882
        %v2884 = vpop.f32.mrf.mxu0
        %2885 = vdwg.mxu0
        %2886 = vmatpush.bf16.msra.mxu0 %v2150
        %2887 = vmatpush.bf16.msra.mxu0 %v2146
        %2888 = vmatpush.bf16.msra.mxu0 %v2142
        %2889 = vmatpush.bf16.msra.mxu0 %v2138
        %2890 = vmatpush.bf16.msra.mxu0 %v2134
        %2891 = vmatpush.bf16.msra.mxu0 %v2130
        %2892 = vmatpush.bf16.msra.mxu0 %v2126
        %2893 = vmatpush.bf16.msra.mxu0 %v2122
        %2894 = vmatmul.bf16.gmra.mxu0 %v1242
        %v2895 = vpop.f32.mrf.mxu0
        %v2896 = vadd.f32 %v2883, %v2895
        %v2897 = vpop.f32.mrf.mxu0
        %2898 = vdwg.mxu0
        %2899 = vmatpush.bf16.msra.mxu0 %v2182
        %2900 = vmatpush.bf16.msra.mxu0 %v2178
        %2901 = vmatpush.bf16.msra.mxu0 %v2174
        %2902 = vmatpush.bf16.msra.mxu0 %v2170
        %2903 = vmatpush.bf16.msra.mxu0 %v2166
        %2904 = vmatpush.bf16.msra.mxu0 %v2162
        %2905 = vmatpush.bf16.msra.mxu0 %v2158
        %2906 = vmatpush.bf16.msra.mxu0 %v2154
        %2907 = vmatmul.bf16.gmra.mxu0 %v1243
        %v2908 = vpop.f32.mrf.mxu0
        %v2909 = vadd.f32 %v2896, %v2908
        %v2910 = vpop.f32.mrf.mxu0
        %2911 = vdwg.mxu0
        %2912 = vmatpush.bf16.msra.mxu0 %v2214
        %2913 = vmatpush.bf16.msra.mxu0 %v2210
        %2914 = vmatpush.bf16.msra.mxu0 %v2206
        %2915 = vmatpush.bf16.msra.mxu0 %v2202
        %2916 = vmatpush.bf16.msra.mxu0 %v2198
        %2917 = vmatpush.bf16.msra.mxu0 %v2194
        %2918 = vmatpush.bf16.msra.mxu0 %v2190
        %2919 = vmatpush.bf16.msra.mxu0 %v2186
        %2920 = vmatmul.bf16.gmra.mxu0 %v1244
        %v2921 = vpop.f32.mrf.mxu0
        %v2922 = vadd.f32 %v2909, %v2921
        %v2923 = vpop.f32.mrf.mxu0
        %2924 = vdwg.mxu0
        %2925 = vmatpush.bf16.msra.mxu0 %v2246
        %2926 = vmatpush.bf16.msra.mxu0 %v2242
        %2927 = vmatpush.bf16.msra.mxu0 %v2238
        %2928 = vmatpush.bf16.msra.mxu0 %v2234
        %2929 = vmatpush.bf16.msra.mxu0 %v2230
        %2930 = vmatpush.bf16.msra.mxu0 %v2226
        %2931 = vmatpush.bf16.msra.mxu0 %v2222
        %2932 = vmatpush.bf16.msra.mxu0 %v2218
        %2933 = vmatmul.bf16.gmra.mxu0 %v1245
        %v2934 = vpop.f32.mrf.mxu0
        %v2935 = vadd.f32 %v2922, %v2934
        %v2936 = vpop.f32.mrf.mxu0
        %2937 = vdwg.mxu0
        %2938 = vmatpush.bf16.msra.mxu0 %v2278
        %2939 = vmatpush.bf16.msra.mxu0 %v2274
        %2940 = vmatpush.bf16.msra.mxu0 %v2270
        %2941 = vmatpush.bf16.msra.mxu0 %v2266
        %2942 = vmatpush.bf16.msra.mxu0 %v2262
        %2943 = vmatpush.bf16.msra.mxu0 %v2258
        %2944 = vmatpush.bf16.msra.mxu0 %v2254
        %2945 = vmatpush.bf16.msra.mxu0 %v2250
        %2946 = vmatmul.bf16.gmra.mxu0 %v1246
        %v2947 = vpop.f32.mrf.mxu0
        %v2948 = vadd.f32 %v2935, %v2947
        %v2949 = vpop.f32.mrf.mxu0
        %2950 = vdwg.mxu0
        %v2951 = vmax.f32 %v2636, 0.0
        %v2952 = vmax.f32 %v2740, 0.0
        %v2953 = vmax.f32 %v2844, 0.0
        %v2954 = vmax.f32 %v2948, 0.0
        %v2955 = vpack.c.bf16 %v2951, %v2951
        %v2956 = vpack.c.bf16 %v2952, %v2952
        %v2957 = vpack.c.bf16 %v2953, %v2953
        %v2958 = vpack.c.bf16 %v2954, %v2954
        %v2959 = vld [vmem:[#allocation3] sm:$0xff]
        %v2960 = vld [vmem:[%s383] sm:$0xf]
        %v2961 = vld [vmem:[%s383 + $0x4] sm:$0xf]
        %v2962 = vld [vmem:[%s383 + $0x8] sm:$0xf]
        %v2963 = vld [vmem:[%s383 + $0xc] sm:$0xf]
        %v2964 = vld [vmem:[%s383 + $0x10] sm:$0xf]
        %v2965 = vld [vmem:[%s383 + $0x14] sm:$0xf]
        %v2966 = vld [vmem:[%s383 + $0x18] sm:$0xf]
        %v2967 = vld [vmem:[%s383 + $0x1c] sm:$0xf]
        %v2968 = vld [vmem:[%s383 + $0x20] sm:$0xf]
        %v2969 = vld [vmem:[%s383 + $0x24] sm:$0xf]
        %v2970 = vld [vmem:[%s383 + $0x28] sm:$0xf]
        %v2971 = vld [vmem:[%s383 + $0x2c] sm:$0xf]
        %v2972 = vld [vmem:[%s383 + $0x30] sm:$0xf]
        %v2973 = vld [vmem:[%s383 + $0x34] sm:$0xf]
        %v2974 = vld [vmem:[%s383 + $0x38] sm:$0xf]
        %v2975 = vld [vmem:[%s383 + $0x3c] sm:$0xf]
        %v2976 = vld [vmem:[%s383 + $0x40] sm:$0xf]
        %v2977 = vld [vmem:[%s383 + $0x44] sm:$0xf]
        %v2978 = vld [vmem:[%s383 + $0x48] sm:$0xf]
        %v2979 = vld [vmem:[%s383 + $0x4c] sm:$0xf]
        %v2980 = vld [vmem:[%s383 + $0x50] sm:$0xf]
        %v2981 = vld [vmem:[%s383 + $0x54] sm:$0xf]
        %v2982 = vld [vmem:[%s383 + $0x58] sm:$0xf]
        %v2983 = vld [vmem:[%s383 + $0x5c] sm:$0xf]
        %v2984 = vld [vmem:[%s383 + $0x60] sm:$0xf]
        %v2985 = vld [vmem:[%s383 + $0x64] sm:$0xf]
        %v2986 = vld [vmem:[%s383 + $0x68] sm:$0xf]
        %v2987 = vld [vmem:[%s383 + $0x6c] sm:$0xf]
        %v2988 = vld [vmem:[%s383 + $0x70] sm:$0xf]
        %v2989 = vld [vmem:[%s383 + $0x74] sm:$0xf]
        %v2990 = vld [vmem:[%s383 + $0x78] sm:$0xf]
        %v2991 = vld [vmem:[%s383 + $0x7c] sm:$0xf]
        %v2992 = vld [vmem:[%s383 + $0x80] sm:$0xf]
        %v2993 = vld [vmem:[%s383 + $0x84] sm:$0xf]
        %v2994 = vld [vmem:[%s383 + $0x88] sm:$0xf]
        %v2995 = vld [vmem:[%s383 + $0x8c] sm:$0xf]
        %v2996 = vld [vmem:[%s383 + $0x90] sm:$0xf]
        %v2997 = vld [vmem:[%s383 + $0x94] sm:$0xf]
        %v2998 = vld [vmem:[%s383 + $0x98] sm:$0xf]
        %v2999 = vld [vmem:[%s383 + $0x9c] sm:$0xf]
        %v3000 = vld [vmem:[%s383 + $0xa0] sm:$0xf]
        %v3001 = vld [vmem:[%s383 + $0xa4] sm:$0xf]
        %v3002 = vld [vmem:[%s383 + $0xa8] sm:$0xf]
        %v3003 = vld [vmem:[%s383 + $0xac] sm:$0xf]
        %v3004 = vld [vmem:[%s383 + $0xb0] sm:$0xf]
        %v3005 = vld [vmem:[%s383 + $0xb4] sm:$0xf]
        %v3006 = vld [vmem:[%s383 + $0xb8] sm:$0xf]
        %v3007 = vld [vmem:[%s383 + $0xbc] sm:$0xf]
        %v3008 = vld [vmem:[%s383 + $0xc0] sm:$0xf]
        %v3009 = vld [vmem:[%s383 + $0xc4] sm:$0xf]
        %v3010 = vld [vmem:[%s383 + $0xc8] sm:$0xf]
        %v3011 = vld [vmem:[%s383 + $0xcc] sm:$0xf]
        %v3012 = vld [vmem:[%s383 + $0xd0] sm:$0xf]
        %v3013 = vld [vmem:[%s383 + $0xd4] sm:$0xf]
        %v3014 = vld [vmem:[%s383 + $0xd8] sm:$0xf]
        %v3015 = vld [vmem:[%s383 + $0xdc] sm:$0xf]
        %v3016 = vld [vmem:[%s383 + $0xe0] sm:$0xf]
        %v3017 = vld [vmem:[%s383 + $0xe4] sm:$0xf]
        %v3018 = vld [vmem:[%s383 + $0xe8] sm:$0xf]
        %v3019 = vld [vmem:[%s383 + $0xec] sm:$0xf]
        %v3020 = vld [vmem:[%s383 + $0xf0] sm:$0xf]
        %v3021 = vld [vmem:[%s383 + $0xf4] sm:$0xf]
        %v3022 = vld [vmem:[%s383 + $0xf8] sm:$0xf]
        %v3023 = vld [vmem:[%s383 + $0xfc] sm:$0xf]
        %v3088 = vunpack.c.l.b16 %v2960
        %v3089 = vunpack.c.l.b16 %v2961
        %v3090 = vunpack.c.l.b16 %v2962
        %v3091 = vunpack.c.l.b16 %v2963
        %v3092 = vunpack.c.l.b16 %v2964
        %v3093 = vunpack.c.l.b16 %v2965
        %v3094 = vunpack.c.l.b16 %v2966
        %v3095 = vunpack.c.l.b16 %v2967
        %v3096 = vunpack.c.l.b16 %v2968
        %v3097 = vunpack.c.l.b16 %v2969
        %v3098 = vunpack.c.l.b16 %v2970
        %v3099 = vunpack.c.l.b16 %v2971
        %v3100 = vunpack.c.l.b16 %v2972
        %v3101 = vunpack.c.l.b16 %v2973
        %v3102 = vunpack.c.l.b16 %v2974
        %v3103 = vunpack.c.l.b16 %v2975
        %v3104 = vunpack.c.l.b16 %v2976
        %v3105 = vunpack.c.l.b16 %v2977
        %v3106 = vunpack.c.l.b16 %v2978
        %v3107 = vunpack.c.l.b16 %v2979
        %v3108 = vunpack.c.l.b16 %v2980
        %v3109 = vunpack.c.l.b16 %v2981
        %v3110 = vunpack.c.l.b16 %v2982
        %v3111 = vunpack.c.l.b16 %v2983
        %v3112 = vunpack.c.l.b16 %v2984
        %v3113 = vunpack.c.l.b16 %v2985
        %v3114 = vunpack.c.l.b16 %v2986
        %v3115 = vunpack.c.l.b16 %v2987
        %v3116 = vunpack.c.l.b16 %v2988
        %v3117 = vunpack.c.l.b16 %v2989
        %v3118 = vunpack.c.l.b16 %v2990
        %v3119 = vunpack.c.l.b16 %v2991
        %v3120 = vunpack.c.l.b16 %v2992
        %v3121 = vunpack.c.l.b16 %v2993
        %v3122 = vunpack.c.l.b16 %v2994
        %v3123 = vunpack.c.l.b16 %v2995
        %v3124 = vunpack.c.l.b16 %v2996
        %v3125 = vunpack.c.l.b16 %v2997
        %v3126 = vunpack.c.l.b16 %v2998
        %v3127 = vunpack.c.l.b16 %v2999
        %v3128 = vunpack.c.l.b16 %v3000
        %v3129 = vunpack.c.l.b16 %v3001
        %v3130 = vunpack.c.l.b16 %v3002
        %v3131 = vunpack.c.l.b16 %v3003
        %v3132 = vunpack.c.l.b16 %v3004
        %v3133 = vunpack.c.l.b16 %v3005
        %v3134 = vunpack.c.l.b16 %v3006
        %v3135 = vunpack.c.l.b16 %v3007
        %v3136 = vunpack.c.l.b16 %v3008
        %v3137 = vunpack.c.l.b16 %v3009
        %v3138 = vunpack.c.l.b16 %v3010
        %v3139 = vunpack.c.l.b16 %v3011
        %v3140 = vunpack.c.l.b16 %v3012
        %v3141 = vunpack.c.l.b16 %v3013
        %v3142 = vunpack.c.l.b16 %v3014
        %v3143 = vunpack.c.l.b16 %v3015
        %v3144 = vunpack.c.l.b16 %v3016
        %v3145 = vunpack.c.l.b16 %v3017
        %v3146 = vunpack.c.l.b16 %v3018
        %v3147 = vunpack.c.l.b16 %v3019
        %v3148 = vunpack.c.l.b16 %v3020
        %v3149 = vunpack.c.l.b16 %v3021
        %v3150 = vunpack.c.l.b16 %v3022
        %v3151 = vunpack.c.l.b16 %v3023
        %v3152 = vpack.c.b16 %v3089, %v3088
        %v3153 = vpack.c.b16 %v3091, %v3090
        %v3154 = vpack.c.b16 %v3093, %v3092
        %v3155 = vpack.c.b16 %v3095, %v3094
        %v3156 = vpack.c.b16 %v3097, %v3096
        %v3157 = vpack.c.b16 %v3099, %v3098
        %v3158 = vpack.c.b16 %v3101, %v3100
        %v3159 = vpack.c.b16 %v3103, %v3102
        %v3160 = vpack.c.b16 %v3105, %v3104
        %v3161 = vpack.c.b16 %v3107, %v3106
        %v3162 = vpack.c.b16 %v3109, %v3108
        %v3163 = vpack.c.b16 %v3111, %v3110
        %v3164 = vpack.c.b16 %v3113, %v3112
        %v3165 = vpack.c.b16 %v3115, %v3114
        %v3166 = vpack.c.b16 %v3117, %v3116
        %v3167 = vpack.c.b16 %v3119, %v3118
        %v3168 = vpack.c.b16 %v3121, %v3120
        %v3169 = vpack.c.b16 %v3123, %v3122
        %v3170 = vpack.c.b16 %v3125, %v3124
        %v3171 = vpack.c.b16 %v3127, %v3126
        %v3172 = vpack.c.b16 %v3129, %v3128
        %v3173 = vpack.c.b16 %v3131, %v3130
        %v3174 = vpack.c.b16 %v3133, %v3132
        %v3175 = vpack.c.b16 %v3135, %v3134
        %v3176 = vpack.c.b16 %v3137, %v3136
        %v3177 = vpack.c.b16 %v3139, %v3138
        %v3178 = vpack.c.b16 %v3141, %v3140
        %v3179 = vpack.c.b16 %v3143, %v3142
        %v3180 = vpack.c.b16 %v3145, %v3144
        %v3181 = vpack.c.b16 %v3147, %v3146
        %v3182 = vpack.c.b16 %v3149, %v3148
        %v3183 = vpack.c.b16 %v3151, %v3150
        %3216 = vmatpush.bf16.msra.mxu0 %v3159
        %3217 = vmatpush.bf16.msra.mxu0 %v3158
        %3218 = vmatpush.bf16.msra.mxu0 %v3157
        %3219 = vmatpush.bf16.msra.mxu0 %v3156
        %3220 = vmatpush.bf16.msra.mxu0 %v3155
        %3221 = vmatpush.bf16.msra.mxu0 %v3154
        %3222 = vmatpush.bf16.msra.mxu0 %v3153
        %3223 = vmatpush.bf16.msra.mxu0 %v3152
        %3224 = vmatmul.bf16.gmra.mxu0 %v2955
        %v3225 = vpop.f32.mrf.mxu0
        %v3226 = vadd.f32 0.0, %v3225
        %v3227 = vpop.f32.mrf.mxu0
        %3228 = vdwg.mxu0
        %3229 = vmatpush.bf16.msra.mxu0 %v3167
        %3230 = vmatpush.bf16.msra.mxu0 %v3166
        %3231 = vmatpush.bf16.msra.mxu0 %v3165
        %3232 = vmatpush.bf16.msra.mxu0 %v3164
        %3233 = vmatpush.bf16.msra.mxu0 %v3163
        %3234 = vmatpush.bf16.msra.mxu0 %v3162
        %3235 = vmatpush.bf16.msra.mxu0 %v3161
        %3236 = vmatpush.bf16.msra.mxu0 %v3160
        %3237 = vmatmul.bf16.gmra.mxu0 %v2956
        %v3238 = vpop.f32.mrf.mxu0
        %v3239 = vadd.f32 %v3226, %v3238
        %v3240 = vpop.f32.mrf.mxu0
        %3241 = vdwg.mxu0
        %3242 = vmatpush.bf16.msra.mxu0 %v3175
        %3243 = vmatpush.bf16.msra.mxu0 %v3174
        %3244 = vmatpush.bf16.msra.mxu0 %v3173
        %3245 = vmatpush.bf16.msra.mxu0 %v3172
        %3246 = vmatpush.bf16.msra.mxu0 %v3171
        %3247 = vmatpush.bf16.msra.mxu0 %v3170
        %3248 = vmatpush.bf16.msra.mxu0 %v3169
        %3249 = vmatpush.bf16.msra.mxu0 %v3168
        %3250 = vmatmul.bf16.gmra.mxu0 %v2957
        %v3251 = vpop.f32.mrf.mxu0
        %v3252 = vadd.f32 %v3239, %v3251
        %v3253 = vpop.f32.mrf.mxu0
        %3254 = vdwg.mxu0
        %3255 = vmatpush.bf16.msra.mxu0 %v3183
        %3256 = vmatpush.bf16.msra.mxu0 %v3182
        %3257 = vmatpush.bf16.msra.mxu0 %v3181
        %3258 = vmatpush.bf16.msra.mxu0 %v3180
        %3259 = vmatpush.bf16.msra.mxu0 %v3179
        %3260 = vmatpush.bf16.msra.mxu0 %v3178
        %3261 = vmatpush.bf16.msra.mxu0 %v3177
        %3262 = vmatpush.bf16.msra.mxu0 %v3176
        %3263 = vmatmul.bf16.gmra.mxu0 %v2958
        %v3264 = vpop.f32.mrf.mxu0
        %v3265 = vadd.f32 %v3252, %v3264
        %v3266 = vpop.f32.mrf.mxu0
        %3267 = vdwg.mxu0
        %v3268 = vadd.f32 %v2959, %v3265
        %3269 = vst [vmem:[#allocation3] sm:$0xff] %v3268
        %p3270 = scmp.eq.s32.totalorder %s27, 3
        // Predicated region
        $region81: #{tpu_custom_call.1} parent=47 // pred_check
          %p3271 = pneg %p3270
        $region82: #{tpu_custom_call.1} parent=47 // pred_check_branch
          %3273 = sbr.rel (%p3271) target = $region84
        $region83: #{tpu_custom_call.1} parent=47 // pred_region
          %v3274 = vld [vmem:[#allocation3] sm:$0xff]
          %v3275 = vld [vmem:[#allocation15] sm:$0x1]
          %v3277 = vperm.slane %v3275, 0
          %v3279 = vadd.f32 %v3274, %v3277
          %3280 = vst [vmem:[#allocation16] sm:$0xff] %v3279
        $region84: #{tpu_custom_call.1} parent=47 // pred_fallthru
          _
        // Predicated region
        $region85: #{tpu_custom_call.1} parent=47 // pred_check
          %p3281 = pneg %p202
        $region86: #{tpu_custom_call.1} parent=47 // pred_check_branch
          %3283 = sbr.rel (%p3281) target = $region88
        $region87: #{tpu_custom_call.1} parent=47 // pred_region
          %3285 = vsyncadd [#allocation6], 0
          %s3287 = sshll.u32 [#allocation16], 4
          %s3288 = int_to_ptr.vmem [resolvable:$true] %s3287
          %s3289 = sshll.u32 %s7, 4
          %s3290 = int_to_ptr.hbm [resolvable:$true] %s3289
          %3292 = dma.vmem_to_hbm [thread:$0]  %s3288, 128, %s3290, [#allocation6]
        $region88: #{tpu_custom_call.1} parent=47 // pred_fallthru
          _
        // Predicated region
        $region89: #{tpu_custom_call.1} parent=47 // pred_check
          %p3293 = pneg %p202
        $region90: #{tpu_custom_call.1} parent=47 // pred_check_branch
          %3295 = sbr.rel (%p3293) target = $region92
        $region91: #{tpu_custom_call.1} parent=47 // pred_region
          %3297 = dma.done [#allocation6], 128
        $region92: #{tpu_custom_call.1} parent=47 // pred_fallthru
          _
      $region48: #{tpu_custom_call.1} parent=5 // pred_fallthru
        _
      %p3298 = scmp.le.s32.totalorder 2, %s22
      // Predicated region
      $region93: #{tpu_custom_call.1} parent=5 // pred_check
        %p3299 = pneg %p3298
      $region94: #{tpu_custom_call.1} parent=5 // pred_check_branch
        %3301 = sbr.rel (%p3299) target = $region96
      $region95: #{tpu_custom_call.1} parent=5 // pred_region
        %s3302 = ssub.s32 %s22, 2
      $region96: #{tpu_custom_call.1} parent=5 // pred_fallthru
        _
    $region6: #{tpu_custom_call.1} parent=1 // loop_footer
      %s26 = sadd.s32 1, %s22
    $region7: #{tpu_custom_call.1} parent=1 // loop_footer_branch
      %21 = sbr.rel target = $region3
    $region8: #{tpu_custom_call.1} parent=1 // loop_exit
      _
    %3303 = vsyncpa [#allocation5], 1
    %s3304 = scalar_lea.sflag [#allocation5], 1
    %3305 = vsyncpa %s3304, 1
    %3306 = vsyncpa [#allocation8], 1
    %3307 = vsyncpa [#allocation11], 1
    %s3308 = scalar_lea.sflag [#allocation11], 1
    %3309 = vsyncpa %s3308, 1
    %3310 = vsyncpa [#allocation14], 1
    %s3311 = scalar_lea.sflag [#allocation14], 1
    %3312 = vsyncpa %s3311, 1
    %3313 = vsyncpa [#allocation6], 1
    %s3314 = scalar_lea.sflag [#allocation6], 1
    %3315 = vsyncpa %s3314, 1

</llo_original>
